<compile_context>
chip_gen: v7x
topology: tpu7x:2x2x1
jax: 0.10.0
libtpu: 0.0.40
codegen_flags: <defaults>
</compile_context>

<pallas_src>
import math
import functools

import jax
import jax.numpy as jnp
from jax import lax
from jax.experimental import pallas as pl
from jax.experimental.pallas import tpu as pltpu


def _round_up(n, m):
    return ((n + m - 1) // m) * m


# --------------------------- fused RNN + head kernel ---------------------------
def make_fused_rnn_kernel(n_layers, pred_len):
    """Kernel ref order:
       x_ref,
       [wih_0, whh_0, b_0, ..., wih_{L-1}, whh_{L-1}, b_{L-1}],
       wreg_ref, breg_ref,            (inputs)
       out_ref,                       (output, (pred_len*B_pad, C_pad))
       seq_ref                        (VMEM scratch, (S, B_pad, H_pad))
    """

    def kernel(*refs):
        x_ref = refs[0]
        layer_refs = [refs[1 + 3 * l: 1 + 3 * (l + 1)] for l in range(n_layers)]
        wreg_ref, breg_ref, out_ref, seq_ref = refs[1 + 3 * n_layers:]

        S, B_pad, H_pad = seq_ref.shape

        for l in range(n_layers):
            wih_ref, whh_ref, b_ref = layer_refs[l]

            # ---- hoisted input projection: one big lane-dense MXU matmul ----
            inp = x_ref[...] if l == 0 else seq_ref[...]       # (S, B_pad, D_l)
            d_in = inp.shape[-1]
            xw = (jnp.dot(inp.reshape(S * B_pad, d_in), wih_ref[...],
                          preferred_element_type=jnp.float32)
                  + b_ref[...])                                # bias = b_ih + b_hh
            seq_ref[...] = xw.reshape(S, B_pad, H_pad)

            # ---- recurrence: only h @ W_hh + tanh on the serial path ----
            whh = whh_ref[...]                                 # hoisted weight load
            h = jnp.zeros((B_pad, H_pad), jnp.float32)
            for t in range(S):                                 # fully unrolled
                h = jnp.tanh(
                    seq_ref[t]
                    + jnp.dot(h, whh, preferred_element_type=jnp.float32))
                seq_ref[t] = h                                 # layer output

        # ---- Linear head, only on the last pred_len timesteps ----
        h_tail = seq_ref[pl.ds(S - pred_len, pred_len)]        # (pred_len,B_pad,H_pad)
        h_tail = h_tail.reshape(pred_len * B_pad, H_pad)
        y = (jnp.dot(h_tail, wreg_ref[...], preferred_element_type=jnp.float32)
             + breg_ref[...])
        out_ref[...] = y.astype(out_ref.dtype)

    return kernel


# ------------------------------ parameter init ---------------------------------
def init_params(key, enc_in, hidden_size, n_layers, c_out):
    """PyTorch-style uniform(-1/sqrt(H), 1/sqrt(H)) init.

    Returns both the raw (unpadded) params for the pure-JAX reference and the
    padded / transposed / bias-fused params consumed by the Pallas kernel.
    """
    D_pad = _round_up(enc_in, 128)
    H_pad = _round_up(hidden_size, 128)
    C_pad = _round_up(c_out, 128)
    k = 1.0 / math.sqrt(hidden_size)

    raw = {"rnn": []}
    padded = {"rnn": [], "D_pad": D_pad, "H_pad": H_pad, "C_pad": C_pad}

    for layer in range(n_layers):
        d_in = enc_in if layer == 0 else hidden_size
        d_in_pad = D_pad if layer == 0 else H_pad
        key, k1, k2, k3, k4 = jax.random.split(key, 5)
        w_ih = jax.random.uniform(k1, (hidden_size, d_in), jnp.float32, -k, k)
        w_hh = jax.random.uniform(k2, (hidden_size, hidden_size), jnp.float32, -k, k)
        b_ih = jax.random.uniform(k3, (hidden_size,), jnp.float32, -k, k)
        b_hh = jax.random.uniform(k4, (hidden_size,), jnp.float32, -k, k)
        raw["rnn"].append((w_ih, w_hh, b_ih, b_hh))

        wih_t = (jnp.zeros((d_in_pad, H_pad), jnp.float32)
                 .at[:d_in, :hidden_size].set(w_ih.T))
        whh_t = (jnp.zeros((H_pad, H_pad), jnp.float32)
                 .at[:hidden_size, :hidden_size].set(w_hh.T))
        bias = (jnp.zeros((1, H_pad), jnp.float32)
                .at[0, :hidden_size].set(b_ih + b_hh))
        padded["rnn"].append((wih_t, whh_t, bias))

    key, k1, k2 = jax.random.split(key, 3)
    w_reg = jax.random.uniform(k1, (c_out, hidden_size), jnp.float32, -k, k)
    b_reg = jax.random.uniform(k2, (c_out,), jnp.float32, -k, k)
    raw["w_reg"] = w_reg
    raw["b_reg"] = b_reg
    padded["reg_w_t"] = (jnp.zeros((H_pad, C_pad), jnp.float32)
                         .at[:hidden_size, :c_out].set(w_reg.T))
    padded["reg_b"] = (jnp.zeros((1, C_pad), jnp.float32)
                       .at[0, :c_out].set(b_reg))

    return {"raw": raw, "padded": padded, "c_out": c_out,
            "hidden_size": hidden_size}


# ------------------------------ model wrapper -----------------------------------
def model_forward(params, x, pred_len):
    """x: (B, S, enc_in) float32, batch_first like the PyTorch module."""
    B, S, D = x.shape
    p = params["padded"]
    D_pad, H_pad, C_pad = p["D_pad"], p["H_pad"], p["C_pad"]
    c_out = params["c_out"]
    n_layers = len(p["rnn"])
    B_pad = _round_up(B, 8)

    # One tiny pad+transpose of the raw input (time-major, lane/sublane aligned).
    # The big per-layer intermediates never leave VMEM.
    x_pad = jnp.zeros((S, B_pad, D_pad), jnp.float32)
    x_pad = x_pad.at[:, :B, :D].set(jnp.transpose(x, (1, 0, 2)))

    flat_w = []
    for (wih_t, whh_t, bias) in p["rnn"]:
        flat_w += [wih_t, whh_t, bias]
    flat_w += [p["reg_w_t"], p["reg_b"]]
    n_inputs = 1 + len(flat_w)

    kernel = make_fused_rnn_kernel(n_layers, pred_len)

    out2d = pl.pallas_call(
        kernel,
        out_shape=jax.ShapeDtypeStruct((pred_len * B_pad, C_pad), jnp.float32),
        in_specs=[pl.BlockSpec(memory_space=pltpu.MemorySpace.VMEM)] * n_inputs,
        out_specs=pl.BlockSpec(memory_space=pltpu.MemorySpace.VMEM),
        scratch_shapes=[pltpu.VMEM((S, B_pad, H_pad), jnp.float32)],
        compiler_params=pltpu.CompilerParams(vmem_limit_bytes=32 * 1024 * 1024),
    )(x_pad, *flat_w)

    y = out2d.reshape(pred_len, B_pad, C_pad)
    y = jnp.transpose(y, (1, 0, 2))[:B, :, :c_out]     # tiny slice of padding
    return y


# ------------------------------ pure-JAX reference ------------------------------
def reference_forward(raw, x, pred_len):
    h_seq = x                                           # (B, S, D)
    B = x.shape[0]
    for (w_ih, w_hh, b_ih, b_hh) in raw["rnn"]:
        H = w_hh.shape[0]

        def step(h, x_t, w_ih=w_ih, w_hh=w_hh, b_ih=b_ih, b_hh=b_hh):
            h_new = jnp.tanh(
                jnp.dot(x_t, w_ih.T, precision=lax.Precision.HIGHEST) + b_ih
                + jnp.dot(h, w_hh.T, precision=lax.Precision.HIGHEST) + b_hh)
            return h_new, h_new

        h0 = jnp.zeros((B, H), jnp.float32)
        _, ys = lax.scan(step, h0, jnp.transpose(h_seq, (1, 0, 2)))
        h_seq = jnp.transpose(ys, (1, 0, 2))
    y = (jnp.dot(h_seq, raw["w_reg"].T, precision=lax.Precision.HIGHEST)
         + raw["b_reg"])
    return y[:, -pred_len:, :]


# ---------------------------------- main ----------------------------------------
if __name__ == "__main__":
    # Small shapes consistent with the module's forward.
    B, S = 2, 8
    enc_in, hidden_size, n_layers, c_out, pred_len = 4, 32, 2, 4, 4

    key = jax.random.PRNGKey(0)
    key, kx, kp = jax.random.split(key, 3)
    x = jax.random.normal(kx, (B, S, enc_in), jnp.float32)
    params = init_params(kp, enc_in, hidden_size, n_layers, c_out)

    out = model_forward(params, x, pred_len)
    out = jax.block_until_ready(out)

    assert out.shape == (B, pred_len, c_out), out.shape
    assert bool(jnp.all(jnp.isfinite(out)))

    ref = jax.block_until_ready(reference_forward(params["raw"], x, pred_len))
    max_err = float(jnp.max(jnp.abs(out - ref)))
    assert jnp.allclose(out, ref, rtol=1e-4, atol=1e-4), max_err

    print("KERNEL_OK")
</pallas_src>

<mosaic_0001>
module attributes {stable_mosaic.version = 11 : i64} {
  func.func @kernel(%arg0: memref<8x8x128xf32, #tpu.memory_space<vmem>>, %arg1: memref<128x128xf32, #tpu.memory_space<vmem>>, %arg2: memref<128x128xf32, #tpu.memory_space<vmem>>, %arg3: memref<1x128xf32, #tpu.memory_space<vmem>>, %arg4: memref<128x128xf32, #tpu.memory_space<vmem>>, %arg5: memref<128x128xf32, #tpu.memory_space<vmem>>, %arg6: memref<1x128xf32, #tpu.memory_space<vmem>>, %arg7: memref<128x128xf32, #tpu.memory_space<vmem>>, %arg8: memref<1x128xf32, #tpu.memory_space<vmem>>, %arg9: memref<32x128xf32, #tpu.memory_space<vmem>>, %arg10: memref<8x8x128xf32, #tpu.memory_space<vmem>>) attributes {dimension_semantics = [], scalar_prefetch = 0 : i64, scratch_operands = 1 : i64, tpu.core_type = #tpu.core_type<tc>} {
    %c0 = arith.constant 0 : index
    %c0_0 = arith.constant 0 : index
    %c0_1 = arith.constant 0 : index
    %0 = vector.load %arg0[%c0, %c0_0, %c0_1] : memref<8x8x128xf32, #tpu.memory_space<vmem>>, vector<8x8x128xf32>
    %1 = vector.shape_cast %0 : vector<8x8x128xf32> to vector<64x128xf32>
    %c0_2 = arith.constant 0 : index
    %c0_3 = arith.constant 0 : index
    %2 = vector.load %arg1[%c0_2, %c0_3] : memref<128x128xf32, #tpu.memory_space<vmem>>, vector<128x128xf32>
    %cst = arith.constant dense<0.000000e+00> : vector<64x128xf32>
    %3 = tpu.matmul %1, %2, %cst {dimension_numbers = #tpu.dot_dimension_numbers<[1], [0], [0], [1], [0, 0, 1, 1], [], []>} : vector<64x128xf32>, vector<128x128xf32>, vector<64x128xf32> -> vector<64x128xf32>
    %c0_4 = arith.constant 0 : index
    %c0_5 = arith.constant 0 : index
    %4 = vector.load %arg3[%c0_4, %c0_5] : memref<1x128xf32, #tpu.memory_space<vmem>>, vector<1x128xf32>
    %5 = vector.broadcast %4 : vector<1x128xf32> to vector<64x128xf32>
    %6 = arith.addf %3, %5 : vector<64x128xf32>
    %7 = vector.shape_cast %6 : vector<64x128xf32> to vector<8x8x128xf32>
    %c0_6 = arith.constant 0 : index
    %c0_7 = arith.constant 0 : index
    %c0_8 = arith.constant 0 : index
    %8 = vector.load %arg10[%c0_6, %c0_7, %c0_8] : memref<8x8x128xf32, #tpu.memory_space<vmem>>, vector<8x8x128xf32>
    tpu.vector_store %arg10[%c0_6, %c0_7, %c0_8], %7 {strides = array<i32>} : memref<8x8x128xf32, #tpu.memory_space<vmem>>, vector<8x8x128xf32>,
    %c0_9 = arith.constant 0 : index
    %c0_10 = arith.constant 0 : index
    %9 = vector.load %arg2[%c0_9, %c0_10] : memref<128x128xf32, #tpu.memory_space<vmem>>, vector<128x128xf32>
    %cst_11 = arith.constant 0.000000e+00 : f32
    %10 = vector.broadcast %cst_11 : f32 to vector<8x128xf32>
    %c0_12 = arith.constant 0 : index
    %c0_13 = arith.constant 0 : index
    %c0_14 = arith.constant 0 : index
    %11 = vector.load %arg10[%c0_12, %c0_13, %c0_14] : memref<8x8x128xf32, #tpu.memory_space<vmem>>, vector<1x8x128xf32>
    %12 = vector.shape_cast %11 : vector<1x8x128xf32> to vector<8x128xf32>
    %cst_15 = arith.constant dense<0.000000e+00> : vector<8x128xf32>
    %13 = tpu.matmul %10, %9, %cst_15 {dimension_numbers = #tpu.dot_dimension_numbers<[1], [0], [0], [1], [0, 0, 1, 1], [], []>} : vector<8x128xf32>, vector<128x128xf32>, vector<8x128xf32> -> vector<8x128xf32>
    %14 = arith.addf %12, %13 : vector<8x128xf32>
    %15 = math.tanh %14 : vector<8x128xf32>
    %c0_16 = arith.constant 0 : index
    %c0_17 = arith.constant 0 : index
    %c0_18 = arith.constant 0 : index
    %16 = vector.load %arg10[%c0_16, %c0_17, %c0_18] : memref<8x8x128xf32, #tpu.memory_space<vmem>>, vector<1x8x128xf32>
    %17 = vector.shape_cast %16 : vector<1x8x128xf32> to vector<8x128xf32>
    %18 = vector.shape_cast %15 : vector<8x128xf32> to vector<1x8x128xf32>
    tpu.vector_store %arg10[%c0_16, %c0_17, %c0_18], %18 {strides = array<i32>} : memref<8x8x128xf32, #tpu.memory_space<vmem>>, vector<1x8x128xf32>,
    %c1 = arith.constant 1 : index
    %c0_19 = arith.constant 0 : index
    %c0_20 = arith.constant 0 : index
    %19 = vector.load %arg10[%c1, %c0_19, %c0_20] : memref<8x8x128xf32, #tpu.memory_space<vmem>>, vector<1x8x128xf32>
    %20 = vector.shape_cast %19 : vector<1x8x128xf32> to vector<8x128xf32>
    %cst_21 = arith.constant dense<0.000000e+00> : vector<8x128xf32>
    %21 = tpu.matmul %15, %9, %cst_21 {dimension_numbers = #tpu.dot_dimension_numbers<[1], [0], [0], [1], [0, 0, 1, 1], [], []>} : vector<8x128xf32>, vector<128x128xf32>, vector<8x128xf32> -> vector<8x128xf32>
    %22 = arith.addf %20, %21 : vector<8x128xf32>
    %23 = math.tanh %22 : vector<8x128xf32>
    %c1_22 = arith.constant 1 : index
    %c0_23 = arith.constant 0 : index
    %c0_24 = arith.constant 0 : index
    %24 = vector.load %arg10[%c1_22, %c0_23, %c0_24] : memref<8x8x128xf32, #tpu.memory_space<vmem>>, vector<1x8x128xf32>
    %25 = vector.shape_cast %24 : vector<1x8x128xf32> to vector<8x128xf32>
    %26 = vector.shape_cast %23 : vector<8x128xf32> to vector<1x8x128xf32>
    tpu.vector_store %arg10[%c1_22, %c0_23, %c0_24], %26 {strides = array<i32>} : memref<8x8x128xf32, #tpu.memory_space<vmem>>, vector<1x8x128xf32>,
    %c2 = arith.constant 2 : index
    %c0_25 = arith.constant 0 : index
    %c0_26 = arith.constant 0 : index
    %27 = vector.load %arg10[%c2, %c0_25, %c0_26] : memref<8x8x128xf32, #tpu.memory_space<vmem>>, vector<1x8x128xf32>
    %28 = vector.shape_cast %27 : vector<1x8x128xf32> to vector<8x128xf32>
    %cst_27 = arith.constant dense<0.000000e+00> : vector<8x128xf32>
    %29 = tpu.matmul %23, %9, %cst_27 {dimension_numbers = #tpu.dot_dimension_numbers<[1], [0], [0], [1], [0, 0, 1, 1], [], []>} : vector<8x128xf32>, vector<128x128xf32>, vector<8x128xf32> -> vector<8x128xf32>
    %30 = arith.addf %28, %29 : vector<8x128xf32>
    %31 = math.tanh %30 : vector<8x128xf32>
    %c2_28 = arith.constant 2 : index
    %c0_29 = arith.constant 0 : index
    %c0_30 = arith.constant 0 : index
    %32 = vector.load %arg10[%c2_28, %c0_29, %c0_30] : memref<8x8x128xf32, #tpu.memory_space<vmem>>, vector<1x8x128xf32>
    %33 = vector.shape_cast %32 : vector<1x8x128xf32> to vector<8x128xf32>
    %34 = vector.shape_cast %31 : vector<8x128xf32> to vector<1x8x128xf32>
    tpu.vector_store %arg10[%c2_28, %c0_29, %c0_30], %34 {strides = array<i32>} : memref<8x8x128xf32, #tpu.memory_space<vmem>>, vector<1x8x128xf32>,
    %c3 = arith.constant 3 : index
    %c0_31 = arith.constant 0 : index
    %c0_32 = arith.constant 0 : index
    %35 = vector.load %arg10[%c3, %c0_31, %c0_32] : memref<8x8x128xf32, #tpu.memory_space<vmem>>, vector<1x8x128xf32>
    %36 = vector.shape_cast %35 : vector<1x8x128xf32> to vector<8x128xf32>
    %cst_33 = arith.constant dense<0.000000e+00> : vector<8x128xf32>
    %37 = tpu.matmul %31, %9, %cst_33 {dimension_numbers = #tpu.dot_dimension_numbers<[1], [0], [0], [1], [0, 0, 1, 1], [], []>} : vector<8x128xf32>, vector<128x128xf32>, vector<8x128xf32> -> vector<8x128xf32>
    %38 = arith.addf %36, %37 : vector<8x128xf32>
    %39 = math.tanh %38 : vector<8x128xf32>
    %c3_34 = arith.constant 3 : index
    %c0_35 = arith.constant 0 : index
    %c0_36 = arith.constant 0 : index
    %40 = vector.load %arg10[%c3_34, %c0_35, %c0_36] : memref<8x8x128xf32, #tpu.memory_space<vmem>>, vector<1x8x128xf32>
    %41 = vector.shape_cast %40 : vector<1x8x128xf32> to vector<8x128xf32>
    %42 = vector.shape_cast %39 : vector<8x128xf32> to vector<1x8x128xf32>
    tpu.vector_store %arg10[%c3_34, %c0_35, %c0_36], %42 {strides = array<i32>} : memref<8x8x128xf32, #tpu.memory_space<vmem>>, vector<1x8x128xf32>,
    %c4 = arith.constant 4 : index
    %c0_37 = arith.constant 0 : index
    %c0_38 = arith.constant 0 : index
    %43 = vector.load %arg10[%c4, %c0_37, %c0_38] : memref<8x8x128xf32, #tpu.memory_space<vmem>>, vector<1x8x128xf32>
    %44 = vector.shape_cast %43 : vector<1x8x128xf32> to vector<8x128xf32>
    %cst_39 = arith.constant dense<0.000000e+00> : vector<8x128xf32>
    %45 = tpu.matmul %39, %9, %cst_39 {dimension_numbers = #tpu.dot_dimension_numbers<[1], [0], [0], [1], [0, 0, 1, 1], [], []>} : vector<8x128xf32>, vector<128x128xf32>, vector<8x128xf32> -> vector<8x128xf32>
    %46 = arith.addf %44, %45 : vector<8x128xf32>
    %47 = math.tanh %46 : vector<8x128xf32>
    %c4_40 = arith.constant 4 : index
    %c0_41 = arith.constant 0 : index
    %c0_42 = arith.constant 0 : index
    %48 = vector.load %arg10[%c4_40, %c0_41, %c0_42] : memref<8x8x128xf32, #tpu.memory_space<vmem>>, vector<1x8x128xf32>
    %49 = vector.shape_cast %48 : vector<1x8x128xf32> to vector<8x128xf32>
    %50 = vector.shape_cast %47 : vector<8x128xf32> to vector<1x8x128xf32>
    tpu.vector_store %arg10[%c4_40, %c0_41, %c0_42], %50 {strides = array<i32>} : memref<8x8x128xf32, #tpu.memory_space<vmem>>, vector<1x8x128xf32>,
    %c5 = arith.constant 5 : index
    %c0_43 = arith.constant 0 : index
    %c0_44 = arith.constant 0 : index
    %51 = vector.load %arg10[%c5, %c0_43, %c0_44] : memref<8x8x128xf32, #tpu.memory_space<vmem>>, vector<1x8x128xf32>
    %52 = vector.shape_cast %51 : vector<1x8x128xf32> to vector<8x128xf32>
    %cst_45 = arith.constant dense<0.000000e+00> : vector<8x128xf32>
    %53 = tpu.matmul %47, %9, %cst_45 {dimension_numbers = #tpu.dot_dimension_numbers<[1], [0], [0], [1], [0, 0, 1, 1], [], []>} : vector<8x128xf32>, vector<128x128xf32>, vector<8x128xf32> -> vector<8x128xf32>
    %54 = arith.addf %52, %53 : vector<8x128xf32>
    %55 = math.tanh %54 : vector<8x128xf32>
    %c5_46 = arith.constant 5 : index
    %c0_47 = arith.constant 0 : index
    %c0_48 = arith.constant 0 : index
    %56 = vector.load %arg10[%c5_46, %c0_47, %c0_48] : memref<8x8x128xf32, #tpu.memory_space<vmem>>, vector<1x8x128xf32>
    %57 = vector.shape_cast %56 : vector<1x8x128xf32> to vector<8x128xf32>
    %58 = vector.shape_cast %55 : vector<8x128xf32> to vector<1x8x128xf32>
    tpu.vector_store %arg10[%c5_46, %c0_47, %c0_48], %58 {strides = array<i32>} : memref<8x8x128xf32, #tpu.memory_space<vmem>>, vector<1x8x128xf32>,
    %c6 = arith.constant 6 : index
    %c0_49 = arith.constant 0 : index
    %c0_50 = arith.constant 0 : index
    %59 = vector.load %arg10[%c6, %c0_49, %c0_50] : memref<8x8x128xf32, #tpu.memory_space<vmem>>, vector<1x8x128xf32>
    %60 = vector.shape_cast %59 : vector<1x8x128xf32> to vector<8x128xf32>
    %cst_51 = arith.constant dense<0.000000e+00> : vector<8x128xf32>
    %61 = tpu.matmul %55, %9, %cst_51 {dimension_numbers = #tpu.dot_dimension_numbers<[1], [0], [0], [1], [0, 0, 1, 1], [], []>} : vector<8x128xf32>, vector<128x128xf32>, vector<8x128xf32> -> vector<8x128xf32>
    %62 = arith.addf %60, %61 : vector<8x128xf32>
    %63 = math.tanh %62 : vector<8x128xf32>
    %c6_52 = arith.constant 6 : index
    %c0_53 = arith.constant 0 : index
    %c0_54 = arith.constant 0 : index
    %64 = vector.load %arg10[%c6_52, %c0_53, %c0_54] : memref<8x8x128xf32, #tpu.memory_space<vmem>>, vector<1x8x128xf32>
    %65 = vector.shape_cast %64 : vector<1x8x128xf32> to vector<8x128xf32>
    %66 = vector.shape_cast %63 : vector<8x128xf32> to vector<1x8x128xf32>
    tpu.vector_store %arg10[%c6_52, %c0_53, %c0_54], %66 {strides = array<i32>} : memref<8x8x128xf32, #tpu.memory_space<vmem>>, vector<1x8x128xf32>,
    %c7 = arith.constant 7 : index
    %c0_55 = arith.constant 0 : index
    %c0_56 = arith.constant 0 : index
    %67 = vector.load %arg10[%c7, %c0_55, %c0_56] : memref<8x8x128xf32, #tpu.memory_space<vmem>>, vector<1x8x128xf32>
    %68 = vector.shape_cast %67 : vector<1x8x128xf32> to vector<8x128xf32>
    %cst_57 = arith.constant dense<0.000000e+00> : vector<8x128xf32>
    %69 = tpu.matmul %63, %9, %cst_57 {dimension_numbers = #tpu.dot_dimension_numbers<[1], [0], [0], [1], [0, 0, 1, 1], [], []>} : vector<8x128xf32>, vector<128x128xf32>, vector<8x128xf32> -> vector<8x128xf32>
    %70 = arith.addf %68, %69 : vector<8x128xf32>
    %71 = math.tanh %70 : vector<8x128xf32>
    %c7_58 = arith.constant 7 : index
    %c0_59 = arith.constant 0 : index
    %c0_60 = arith.constant 0 : index
    %72 = vector.load %arg10[%c7_58, %c0_59, %c0_60] : memref<8x8x128xf32, #tpu.memory_space<vmem>>, vector<1x8x128xf32>
    %73 = vector.shape_cast %72 : vector<1x8x128xf32> to vector<8x128xf32>
    %74 = vector.shape_cast %71 : vector<8x128xf32> to vector<1x8x128xf32>
    tpu.vector_store %arg10[%c7_58, %c0_59, %c0_60], %74 {strides = array<i32>} : memref<8x8x128xf32, #tpu.memory_space<vmem>>, vector<1x8x128xf32>,
    %c0_61 = arith.constant 0 : index
    %c0_62 = arith.constant 0 : index
    %c0_63 = arith.constant 0 : index
    %75 = vector.load %arg10[%c0_61, %c0_62, %c0_63] : memref<8x8x128xf32, #tpu.memory_space<vmem>>, vector<8x8x128xf32>
    %76 = vector.shape_cast %75 : vector<8x8x128xf32> to vector<64x128xf32>
    %c0_64 = arith.constant 0 : index
    %c0_65 = arith.constant 0 : index
    %77 = vector.load %arg4[%c0_64, %c0_65] : memref<128x128xf32, #tpu.memory_space<vmem>>, vector<128x128xf32>
    %cst_66 = arith.constant dense<0.000000e+00> : vector<64x128xf32>
    %78 = tpu.matmul %76, %77, %cst_66 {dimension_numbers = #tpu.dot_dimension_numbers<[1], [0], [0], [1], [0, 0, 1, 1], [], []>} : vector<64x128xf32>, vector<128x128xf32>, vector<64x128xf32> -> vector<64x128xf32>
    %c0_67 = arith.constant 0 : index
    %c0_68 = arith.constant 0 : index
    %79 = vector.load %arg6[%c0_67, %c0_68] : memref<1x128xf32, #tpu.memory_space<vmem>>, vector<1x128xf32>
    %80 = vector.broadcast %79 : vector<1x128xf32> to vector<64x128xf32>
    %81 = arith.addf %78, %80 : vector<64x128xf32>
    %82 = vector.shape_cast %81 : vector<64x128xf32> to vector<8x8x128xf32>
    %c0_69 = arith.constant 0 : index
    %c0_70 = arith.constant 0 : index
    %c0_71 = arith.constant 0 : index
    %83 = vector.load %arg10[%c0_69, %c0_70, %c0_71] : memref<8x8x128xf32, #tpu.memory_space<vmem>>, vector<8x8x128xf32>
    tpu.vector_store %arg10[%c0_69, %c0_70, %c0_71], %82 {strides = array<i32>} : memref<8x8x128xf32, #tpu.memory_space<vmem>>, vector<8x8x128xf32>,
    %c0_72 = arith.constant 0 : index
    %c0_73 = arith.constant 0 : index
    %84 = vector.load %arg5[%c0_72, %c0_73] : memref<128x128xf32, #tpu.memory_space<vmem>>, vector<128x128xf32>
    %cst_74 = arith.constant 0.000000e+00 : f32
    %85 = vector.broadcast %cst_74 : f32 to vector<8x128xf32>
    %c0_75 = arith.constant 0 : index
    %c0_76 = arith.constant 0 : index
    %c0_77 = arith.constant 0 : index
    %86 = vector.load %arg10[%c0_75, %c0_76, %c0_77] : memref<8x8x128xf32, #tpu.memory_space<vmem>>, vector<1x8x128xf32>
    %87 = vector.shape_cast %86 : vector<1x8x128xf32> to vector<8x128xf32>
    %cst_78 = arith.constant dense<0.000000e+00> : vector<8x128xf32>
    %88 = tpu.matmul %85, %84, %cst_78 {dimension_numbers = #tpu.dot_dimension_numbers<[1], [0], [0], [1], [0, 0, 1, 1], [], []>} : vector<8x128xf32>, vector<128x128xf32>, vector<8x128xf32> -> vector<8x128xf32>
    %89 = arith.addf %87, %88 : vector<8x128xf32>
    %90 = math.tanh %89 : vector<8x128xf32>
    %c0_79 = arith.constant 0 : index
    %c0_80 = arith.constant 0 : index
    %c0_81 = arith.constant 0 : index
    %91 = vector.load %arg10[%c0_79, %c0_80, %c0_81] : memref<8x8x128xf32, #tpu.memory_space<vmem>>, vector<1x8x128xf32>
    %92 = vector.shape_cast %91 : vector<1x8x128xf32> to vector<8x128xf32>
    %93 = vector.shape_cast %90 : vector<8x128xf32> to vector<1x8x128xf32>
    tpu.vector_store %arg10[%c0_79, %c0_80, %c0_81], %93 {strides = array<i32>} : memref<8x8x128xf32, #tpu.memory_space<vmem>>, vector<1x8x128xf32>,
    %c1_82 = arith.constant 1 : index
    %c0_83 = arith.constant 0 : index
    %c0_84 = arith.constant 0 : index
    %94 = vector.load %arg10[%c1_82, %c0_83, %c0_84] : memref<8x8x128xf32, #tpu.memory_space<vmem>>, vector<1x8x128xf32>
    %95 = vector.shape_cast %94 : vector<1x8x128xf32> to vector<8x128xf32>
    %cst_85 = arith.constant dense<0.000000e+00> : vector<8x128xf32>
    %96 = tpu.matmul %90, %84, %cst_85 {dimension_numbers = #tpu.dot_dimension_numbers<[1], [0], [0], [1], [0, 0, 1, 1], [], []>} : vector<8x128xf32>, vector<128x128xf32>, vector<8x128xf32> -> vector<8x128xf32>
    %97 = arith.addf %95, %96 : vector<8x128xf32>
    %98 = math.tanh %97 : vector<8x128xf32>
    %c1_86 = arith.constant 1 : index
    %c0_87 = arith.constant 0 : index
    %c0_88 = arith.constant 0 : index
    %99 = vector.load %arg10[%c1_86, %c0_87, %c0_88] : memref<8x8x128xf32, #tpu.memory_space<vmem>>, vector<1x8x128xf32>
    %100 = vector.shape_cast %99 : vector<1x8x128xf32> to vector<8x128xf32>
    %101 = vector.shape_cast %98 : vector<8x128xf32> to vector<1x8x128xf32>
    tpu.vector_store %arg10[%c1_86, %c0_87, %c0_88], %101 {strides = array<i32>} : memref<8x8x128xf32, #tpu.memory_space<vmem>>, vector<1x8x128xf32>,
    %c2_89 = arith.constant 2 : index
    %c0_90 = arith.constant 0 : index
    %c0_91 = arith.constant 0 : index
    %102 = vector.load %arg10[%c2_89, %c0_90, %c0_91] : memref<8x8x128xf32, #tpu.memory_space<vmem>>, vector<1x8x128xf32>
    %103 = vector.shape_cast %102 : vector<1x8x128xf32> to vector<8x128xf32>
    %cst_92 = arith.constant dense<0.000000e+00> : vector<8x128xf32>
    %104 = tpu.matmul %98, %84, %cst_92 {dimension_numbers = #tpu.dot_dimension_numbers<[1], [0], [0], [1], [0, 0, 1, 1], [], []>} : vector<8x128xf32>, vector<128x128xf32>, vector<8x128xf32> -> vector<8x128xf32>
    %105 = arith.addf %103, %104 : vector<8x128xf32>
    %106 = math.tanh %105 : vector<8x128xf32>
    %c2_93 = arith.constant 2 : index
    %c0_94 = arith.constant 0 : index
    %c0_95 = arith.constant 0 : index
    %107 = vector.load %arg10[%c2_93, %c0_94, %c0_95] : memref<8x8x128xf32, #tpu.memory_space<vmem>>, vector<1x8x128xf32>
    %108 = vector.shape_cast %107 : vector<1x8x128xf32> to vector<8x128xf32>
    %109 = vector.shape_cast %106 : vector<8x128xf32> to vector<1x8x128xf32>
    tpu.vector_store %arg10[%c2_93, %c0_94, %c0_95], %109 {strides = array<i32>} : memref<8x8x128xf32, #tpu.memory_space<vmem>>, vector<1x8x128xf32>,
    %c3_96 = arith.constant 3 : index
    %c0_97 = arith.constant 0 : index
    %c0_98 = arith.constant 0 : index
    %110 = vector.load %arg10[%c3_96, %c0_97, %c0_98] : memref<8x8x128xf32, #tpu.memory_space<vmem>>, vector<1x8x128xf32>
    %111 = vector.shape_cast %110 : vector<1x8x128xf32> to vector<8x128xf32>
    %cst_99 = arith.constant dense<0.000000e+00> : vector<8x128xf32>
    %112 = tpu.matmul %106, %84, %cst_99 {dimension_numbers = #tpu.dot_dimension_numbers<[1], [0], [0], [1], [0, 0, 1, 1], [], []>} : vector<8x128xf32>, vector<128x128xf32>, vector<8x128xf32> -> vector<8x128xf32>
    %113 = arith.addf %111, %112 : vector<8x128xf32>
    %114 = math.tanh %113 : vector<8x128xf32>
    %c3_100 = arith.constant 3 : index
    %c0_101 = arith.constant 0 : index
    %c0_102 = arith.constant 0 : index
    %115 = vector.load %arg10[%c3_100, %c0_101, %c0_102] : memref<8x8x128xf32, #tpu.memory_space<vmem>>, vector<1x8x128xf32>
    %116 = vector.shape_cast %115 : vector<1x8x128xf32> to vector<8x128xf32>
    %117 = vector.shape_cast %114 : vector<8x128xf32> to vector<1x8x128xf32>
    tpu.vector_store %arg10[%c3_100, %c0_101, %c0_102], %117 {strides = array<i32>} : memref<8x8x128xf32, #tpu.memory_space<vmem>>, vector<1x8x128xf32>,
    %c4_103 = arith.constant 4 : index
    %c0_104 = arith.constant 0 : index
    %c0_105 = arith.constant 0 : index
    %118 = vector.load %arg10[%c4_103, %c0_104, %c0_105] : memref<8x8x128xf32, #tpu.memory_space<vmem>>, vector<1x8x128xf32>
    %119 = vector.shape_cast %118 : vector<1x8x128xf32> to vector<8x128xf32>
    %cst_106 = arith.constant dense<0.000000e+00> : vector<8x128xf32>
    %120 = tpu.matmul %114, %84, %cst_106 {dimension_numbers = #tpu.dot_dimension_numbers<[1], [0], [0], [1], [0, 0, 1, 1], [], []>} : vector<8x128xf32>, vector<128x128xf32>, vector<8x128xf32> -> vector<8x128xf32>
    %121 = arith.addf %119, %120 : vector<8x128xf32>
    %122 = math.tanh %121 : vector<8x128xf32>
    %c4_107 = arith.constant 4 : index
    %c0_108 = arith.constant 0 : index
    %c0_109 = arith.constant 0 : index
    %123 = vector.load %arg10[%c4_107, %c0_108, %c0_109] : memref<8x8x128xf32, #tpu.memory_space<vmem>>, vector<1x8x128xf32>
    %124 = vector.shape_cast %123 : vector<1x8x128xf32> to vector<8x128xf32>
    %125 = vector.shape_cast %122 : vector<8x128xf32> to vector<1x8x128xf32>
    tpu.vector_store %arg10[%c4_107, %c0_108, %c0_109], %125 {strides = array<i32>} : memref<8x8x128xf32, #tpu.memory_space<vmem>>, vector<1x8x128xf32>,
    %c5_110 = arith.constant 5 : index
    %c0_111 = arith.constant 0 : index
    %c0_112 = arith.constant 0 : index
    %126 = vector.load %arg10[%c5_110, %c0_111, %c0_112] : memref<8x8x128xf32, #tpu.memory_space<vmem>>, vector<1x8x128xf32>
    %127 = vector.shape_cast %126 : vector<1x8x128xf32> to vector<8x128xf32>
    %cst_113 = arith.constant dense<0.000000e+00> : vector<8x128xf32>
    %128 = tpu.matmul %122, %84, %cst_113 {dimension_numbers = #tpu.dot_dimension_numbers<[1], [0], [0], [1], [0, 0, 1, 1], [], []>} : vector<8x128xf32>, vector<128x128xf32>, vector<8x128xf32> -> vector<8x128xf32>
    %129 = arith.addf %127, %128 : vector<8x128xf32>
    %130 = math.tanh %129 : vector<8x128xf32>
    %c5_114 = arith.constant 5 : index
    %c0_115 = arith.constant 0 : index
    %c0_116 = arith.constant 0 : index
    %131 = vector.load %arg10[%c5_114, %c0_115, %c0_116] : memref<8x8x128xf32, #tpu.memory_space<vmem>>, vector<1x8x128xf32>
    %132 = vector.shape_cast %131 : vector<1x8x128xf32> to vector<8x128xf32>
    %133 = vector.shape_cast %130 : vector<8x128xf32> to vector<1x8x128xf32>
    tpu.vector_store %arg10[%c5_114, %c0_115, %c0_116], %133 {strides = array<i32>} : memref<8x8x128xf32, #tpu.memory_space<vmem>>, vector<1x8x128xf32>,
    %c6_117 = arith.constant 6 : index
    %c0_118 = arith.constant 0 : index
    %c0_119 = arith.constant 0 : index
    %134 = vector.load %arg10[%c6_117, %c0_118, %c0_119] : memref<8x8x128xf32, #tpu.memory_space<vmem>>, vector<1x8x128xf32>
    %135 = vector.shape_cast %134 : vector<1x8x128xf32> to vector<8x128xf32>
    %cst_120 = arith.constant dense<0.000000e+00> : vector<8x128xf32>
    %136 = tpu.matmul %130, %84, %cst_120 {dimension_numbers = #tpu.dot_dimension_numbers<[1], [0], [0], [1], [0, 0, 1, 1], [], []>} : vector<8x128xf32>, vector<128x128xf32>, vector<8x128xf32> -> vector<8x128xf32>
    %137 = arith.addf %135, %136 : vector<8x128xf32>
    %138 = math.tanh %137 : vector<8x128xf32>
    %c6_121 = arith.constant 6 : index
    %c0_122 = arith.constant 0 : index
    %c0_123 = arith.constant 0 : index
    %139 = vector.load %arg10[%c6_121, %c0_122, %c0_123] : memref<8x8x128xf32, #tpu.memory_space<vmem>>, vector<1x8x128xf32>
    %140 = vector.shape_cast %139 : vector<1x8x128xf32> to vector<8x128xf32>
    %141 = vector.shape_cast %138 : vector<8x128xf32> to vector<1x8x128xf32>
    tpu.vector_store %arg10[%c6_121, %c0_122, %c0_123], %141 {strides = array<i32>} : memref<8x8x128xf32, #tpu.memory_space<vmem>>, vector<1x8x128xf32>,
    %c7_124 = arith.constant 7 : index
    %c0_125 = arith.constant 0 : index
    %c0_126 = arith.constant 0 : index
    %142 = vector.load %arg10[%c7_124, %c0_125, %c0_126] : memref<8x8x128xf32, #tpu.memory_space<vmem>>, vector<1x8x128xf32>
    %143 = vector.shape_cast %142 : vector<1x8x128xf32> to vector<8x128xf32>
    %cst_127 = arith.constant dense<0.000000e+00> : vector<8x128xf32>
    %144 = tpu.matmul %138, %84, %cst_127 {dimension_numbers = #tpu.dot_dimension_numbers<[1], [0], [0], [1], [0, 0, 1, 1], [], []>} : vector<8x128xf32>, vector<128x128xf32>, vector<8x128xf32> -> vector<8x128xf32>
    %145 = arith.addf %143, %144 : vector<8x128xf32>
    %146 = math.tanh %145 : vector<8x128xf32>
    %c7_128 = arith.constant 7 : index
    %c0_129 = arith.constant 0 : index
    %c0_130 = arith.constant 0 : index
    %147 = vector.load %arg10[%c7_128, %c0_129, %c0_130] : memref<8x8x128xf32, #tpu.memory_space<vmem>>, vector<1x8x128xf32>
    %148 = vector.shape_cast %147 : vector<1x8x128xf32> to vector<8x128xf32>
    %149 = vector.shape_cast %146 : vector<8x128xf32> to vector<1x8x128xf32>
    tpu.vector_store %arg10[%c7_128, %c0_129, %c0_130], %149 {strides = array<i32>} : memref<8x8x128xf32, #tpu.memory_space<vmem>>, vector<1x8x128xf32>,
    %c4_131 = arith.constant 4 : index
    %c0_132 = arith.constant 0 : index
    %c0_133 = arith.constant 0 : index
    %150 = vector.load %arg10[%c4_131, %c0_132, %c0_133] : memref<8x8x128xf32, #tpu.memory_space<vmem>>, vector<4x8x128xf32>
    %151 = vector.shape_cast %150 : vector<4x8x128xf32> to vector<32x128xf32>
    %c0_134 = arith.constant 0 : index
    %c0_135 = arith.constant 0 : index
    %152 = vector.load %arg7[%c0_134, %c0_135] : memref<128x128xf32, #tpu.memory_space<vmem>>, vector<128x128xf32>
    %cst_136 = arith.constant dense<0.000000e+00> : vector<32x128xf32>
    %153 = tpu.matmul %151, %152, %cst_136 {dimension_numbers = #tpu.dot_dimension_numbers<[1], [0], [0], [1], [0, 0, 1, 1], [], []>} : vector<32x128xf32>, vector<128x128xf32>, vector<32x128xf32> -> vector<32x128xf32>
    %c0_137 = arith.constant 0 : index
    %c0_138 = arith.constant 0 : index
    %154 = vector.load %arg8[%c0_137, %c0_138] : memref<1x128xf32, #tpu.memory_space<vmem>>, vector<1x128xf32>
    %155 = vector.broadcast %154 : vector<1x128xf32> to vector<32x128xf32>
    %156 = arith.addf %153, %155 : vector<32x128xf32>
    %c0_139 = arith.constant 0 : index
    %c0_140 = arith.constant 0 : index
    %157 = vector.load %arg9[%c0_139, %c0_140] : memref<32x128xf32, #tpu.memory_space<vmem>>, vector<32x128xf32>
    tpu.vector_store %arg9[%c0_139, %c0_140], %156 {strides = array<i32>} : memref<32x128xf32, #tpu.memory_space<vmem>>, vector<32x128xf32>,
    return
  }
}

</mosaic_0001>

<llo_original>
// kernel: tpu_custom_call.1
$region0: #{tpu_custom_call.1}
  #allocation0 [shape = 'u32[]', space=smem, size = 0x4, offset = 0x4, fixed_abs, tag = 'smem constant byte address 0x4 - core index']
  #allocation1 [shape = 'u32[144,128]{1,0:T(1,128)}', space=vmem, size = 0x12000, scoped, tag = 'internal scratch']
  #allocation2 [shape = 'f32[8,8,128]{2,1,0:T(8,128)}', space=vmem, size = 0x8000, scoped, tag = 'scratch operand']
  %s0 = inlined_call_operand.hbm [shape: f32[8,8,128], index: 0, kind: input, shape index: {}]
  %s1 = inlined_call_operand.hbm [shape: f32[128,128], index: 1, kind: input, shape index: {}]
  %s2 = inlined_call_operand.hbm [shape: f32[128,128], index: 2, kind: input, shape index: {}]
  %s3 = inlined_call_operand.vmem [shape: f32[1,128], index: 3, kind: input, shape index: {}]
  %s4 = inlined_call_operand.hbm [shape: f32[128,128], index: 4, kind: input, shape index: {}]
  %s5 = inlined_call_operand.hbm [shape: f32[128,128], index: 5, kind: input, shape index: {}]
  %s6 = inlined_call_operand.vmem [shape: f32[1,128], index: 6, kind: input, shape index: {}]
  %s7 = inlined_call_operand.hbm [shape: f32[128,128], index: 7, kind: input, shape index: {}]
  %s8 = inlined_call_operand.vmem [shape: f32[1,128], index: 8, kind: input, shape index: {}]
  %s9 = inlined_call_operand.hbm [shape: f32[32,128], index: 9, kind: output, shape index: {}]
  %s10 = sld [smem:[#allocation0]]
  $region70: #{tpu_custom_call.1} parent=0
    _
  %s12 = ssub.s32 1, %s10
  %s13 = scalar_select 0, %s12, %s10
  $region1: #{tpu_custom_call.1} parent=0
    #allocation3 [shape = 'u8[32768]{0}', space=vmem, size = 0x8000, scoped, tag = 'input window, operand 0, single buffered']
    #allocation4 [shape = 's32[1]{0}', space=sflag, size = 0x4, scoped, tag = 'scoped memory for tpu_custom_call.1']
    #allocation5 [shape = 's32[1]{0}', space=sflag, size = 0x4, scoped, tag = 'scoped memory for tpu_custom_call.1']
    #allocation6 [shape = 'u8[65536]{0}', space=vmem, size = 0x10000, scoped, tag = 'input window, operand 1, single buffered']
    #allocation7 [shape = 's32[1]{0}', space=sflag, size = 0x4, scoped, tag = 'scoped memory for tpu_custom_call.1']
    #allocation8 [shape = 'u8[65536]{0}', space=vmem, size = 0x10000, scoped, tag = 'input window, operand 2, single buffered']
    #allocation9 [shape = 'u8[65536]{0}', space=vmem, size = 0x10000, scoped, tag = 'input window, operand 4, single buffered']
    #allocation10 [shape = 's32[1]{0}', space=sflag, size = 0x4, scoped, tag = 'scoped memory for tpu_custom_call.1']
    #allocation11 [shape = 'u8[65536]{0}', space=vmem, size = 0x10000, scoped, tag = 'input window, operand 5, single buffered']
    #allocation12 [shape = 'u8[65536]{0}', space=vmem, size = 0x10000, scoped, tag = 'input window, operand 7, single buffered']
    #allocation13 [shape = 's32[1]{0}', space=sflag, size = 0x4, scoped, tag = 'scoped memory for tpu_custom_call.1']
    #allocation14 [shape = 'u8[16384]{0}', space=vmem, size = 0x4000, scoped, tag = 'output window, operand 0, single buffered']
    %14 = vsyncpa [#allocation4], 0
    %15 = vsyncpa [#allocation7], 0
    %16 = vsyncpa [#allocation10], 0
    %17 = vsyncpa [#allocation13], 0
    %18 = vsyncpa [#allocation5], 0
    // Predicated region
    $region2: #{tpu_custom_call.1} parent=1 // pred_check
      _
    $region3: #{tpu_custom_call.1} parent=1 // pred_check_branch
      %20 = sbr.rel (0) target = $region5
    $region4: #{tpu_custom_call.1} parent=1 // pred_region
      %s22 = ssub.s32 1024, 1024
      %23 = vsyncadd [#allocation4], %s22
      %s24 = sshll.u32 [#allocation3], 4
      %s25 = int_to_ptr.vmem [resolvable:$true] %s24
      %30 = dma.hbm_to_vmem [thread:$0]  %s0, 1024, %s25, [#allocation4], 128, 128, 8
    $region5: #{tpu_custom_call.1} parent=1 // pred_fallthru
      _
    // Predicated region
    $region6: #{tpu_custom_call.1} parent=1 // pred_check
      _
    $region7: #{tpu_custom_call.1} parent=1 // pred_check_branch
      %32 = sbr.rel (0) target = $region9
    $region8: #{tpu_custom_call.1} parent=1 // pred_region
      %s34 = ssub.s32 2048, 2048
      %35 = vsyncadd [#allocation7], %s34
      %s36 = sshll.u32 [#allocation6], 4
      %s37 = int_to_ptr.vmem [resolvable:$true] %s36
      %42 = dma.hbm_to_vmem [thread:$0]  %s1, 2048, %s37, [#allocation7], 128, 128, 8
    $region9: #{tpu_custom_call.1} parent=1 // pred_fallthru
      _
    // Predicated region
    $region10: #{tpu_custom_call.1} parent=1 // pred_check
      _
    $region11: #{tpu_custom_call.1} parent=1 // pred_check_branch
      %44 = sbr.rel (0) target = $region13
    $region12: #{tpu_custom_call.1} parent=1 // pred_region
      %s46 = ssub.s32 2048, 2048
      %47 = vsyncadd [#allocation7], %s46
      %s48 = sshll.u32 [#allocation8], 4
      %s49 = int_to_ptr.vmem [resolvable:$true] %s48
      %54 = dma.hbm_to_vmem [thread:$0]  %s2, 2048, %s49, [#allocation7], 128, 128, 8
    $region13: #{tpu_custom_call.1} parent=1 // pred_fallthru
      _
    // Predicated region
    $region14: #{tpu_custom_call.1} parent=1 // pred_check
      _
    $region15: #{tpu_custom_call.1} parent=1 // pred_check_branch
      %56 = sbr.rel (0) target = $region17
    $region16: #{tpu_custom_call.1} parent=1 // pred_region
      _
    $region17: #{tpu_custom_call.1} parent=1 // pred_fallthru
      _
    // Predicated region
    $region18: #{tpu_custom_call.1} parent=1 // pred_check
      _
    $region19: #{tpu_custom_call.1} parent=1 // pred_check_branch
      %58 = sbr.rel (0) target = $region21
    $region20: #{tpu_custom_call.1} parent=1 // pred_region
      %s60 = ssub.s32 2048, 2048
      %61 = vsyncadd [#allocation10], %s60
      %s62 = sshll.u32 [#allocation9], 4
      %s63 = int_to_ptr.vmem [resolvable:$true] %s62
      %68 = dma.hbm_to_vmem [thread:$0]  %s4, 2048, %s63, [#allocation10], 128, 128, 8
    $region21: #{tpu_custom_call.1} parent=1 // pred_fallthru
      _
    // Predicated region
    $region22: #{tpu_custom_call.1} parent=1 // pred_check
      _
    $region23: #{tpu_custom_call.1} parent=1 // pred_check_branch
      %70 = sbr.rel (0) target = $region25
    $region24: #{tpu_custom_call.1} parent=1 // pred_region
      %s72 = ssub.s32 2048, 2048
      %73 = vsyncadd [#allocation10], %s72
      %s74 = sshll.u32 [#allocation11], 4
      %s75 = int_to_ptr.vmem [resolvable:$true] %s74
      %80 = dma.hbm_to_vmem [thread:$0]  %s5, 2048, %s75, [#allocation10], 128, 128, 8
    $region25: #{tpu_custom_call.1} parent=1 // pred_fallthru
      _
    // Predicated region
    $region26: #{tpu_custom_call.1} parent=1 // pred_check
      _
    $region27: #{tpu_custom_call.1} parent=1 // pred_check_branch
      %82 = sbr.rel (0) target = $region29
    $region28: #{tpu_custom_call.1} parent=1 // pred_region
      _
    $region29: #{tpu_custom_call.1} parent=1 // pred_fallthru
      _
    // Predicated region
    $region30: #{tpu_custom_call.1} parent=1 // pred_check
      _
    $region31: #{tpu_custom_call.1} parent=1 // pred_check_branch
      %84 = sbr.rel (0) target = $region33
    $region32: #{tpu_custom_call.1} parent=1 // pred_region
      %s86 = ssub.s32 2048, 2048
      %87 = vsyncadd [#allocation13], %s86
      %s88 = sshll.u32 [#allocation12], 4
      %s89 = int_to_ptr.vmem [resolvable:$true] %s88
      %94 = dma.hbm_to_vmem [thread:$0]  %s7, 2048, %s89, [#allocation13], 128, 128, 8
    $region33: #{tpu_custom_call.1} parent=1 // pred_fallthru
      _
    // Predicated region
    $region34: #{tpu_custom_call.1} parent=1 // pred_check
      _
    $region35: #{tpu_custom_call.1} parent=1 // pred_check_branch
      %96 = sbr.rel (0) target = $region37
    $region36: #{tpu_custom_call.1} parent=1 // pred_region
      _
    $region37: #{tpu_custom_call.1} parent=1 // pred_fallthru
      _
    // Predicated region
    $region38: #{tpu_custom_call.1} parent=1 // pred_check
      _
    $region39: #{tpu_custom_call.1} parent=1 // pred_check_branch
      %98 = sbr.rel (0) target = $region41
    $region40: #{tpu_custom_call.1} parent=1 // pred_region
      %99 = dma.done [#allocation4], 1024
    $region41: #{tpu_custom_call.1} parent=1 // pred_fallthru
      _
    // Predicated region
    $region42: #{tpu_custom_call.1} parent=1 // pred_check
      _
    $region43: #{tpu_custom_call.1} parent=1 // pred_check_branch
      %101 = sbr.rel (0) target = $region45
    $region44: #{tpu_custom_call.1} parent=1 // pred_region
      %102 = dma.done [#allocation7], 2048
    $region45: #{tpu_custom_call.1} parent=1 // pred_fallthru
      _
    // Predicated region
    $region46: #{tpu_custom_call.1} parent=1 // pred_check
      _
    $region47: #{tpu_custom_call.1} parent=1 // pred_check_branch
      %104 = sbr.rel (0) target = $region49
    $region48: #{tpu_custom_call.1} parent=1 // pred_region
      %105 = dma.done [#allocation7], 2048
    $region49: #{tpu_custom_call.1} parent=1 // pred_fallthru
      _
    // Predicated region
    $region50: #{tpu_custom_call.1} parent=1 // pred_check
      _
    $region51: #{tpu_custom_call.1} parent=1 // pred_check_branch
      %107 = sbr.rel (0) target = $region53
    $region52: #{tpu_custom_call.1} parent=1 // pred_region
      %108 = dma.done [#allocation10], 2048
    $region53: #{tpu_custom_call.1} parent=1 // pred_fallthru
      _
    // Predicated region
    $region54: #{tpu_custom_call.1} parent=1 // pred_check
      _
    $region55: #{tpu_custom_call.1} parent=1 // pred_check_branch
      %110 = sbr.rel (0) target = $region57
    $region56: #{tpu_custom_call.1} parent=1 // pred_region
      %111 = dma.done [#allocation10], 2048
    $region57: #{tpu_custom_call.1} parent=1 // pred_fallthru
      _
    // Predicated region
    $region58: #{tpu_custom_call.1} parent=1 // pred_check
      _
    $region59: #{tpu_custom_call.1} parent=1 // pred_check_branch
      %113 = sbr.rel (0) target = $region61
    $region60: #{tpu_custom_call.1} parent=1 // pred_region
      %114 = dma.done [#allocation13], 2048
    $region61: #{tpu_custom_call.1} parent=1 // pred_fallthru
      _
    %v115 = vld [vmem:[#allocation3] sm:$0xff]
    %v116 = vld [vmem:[#allocation3 + $0x8] sm:$0xff]
    %v117 = vld [vmem:[#allocation3 + $0x10] sm:$0xff]
    %v118 = vld [vmem:[#allocation3 + $0x18] sm:$0xff]
    %v119 = vld [vmem:[#allocation3 + $0x20] sm:$0xff]
    %v120 = vld [vmem:[#allocation3 + $0x28] sm:$0xff]
    %v121 = vld [vmem:[#allocation3 + $0x30] sm:$0xff]
    %v122 = vld [vmem:[#allocation3 + $0x38] sm:$0xff]
    %v123 = vld [vmem:[#allocation6] sm:$0xff]
    %v124 = vld [vmem:[#allocation6 + $0x8] sm:$0xff]
    %v125 = vld [vmem:[#allocation6 + $0x10] sm:$0xff]
    %v126 = vld [vmem:[#allocation6 + $0x18] sm:$0xff]
    %v127 = vld [vmem:[#allocation6 + $0x20] sm:$0xff]
    %v128 = vld [vmem:[#allocation6 + $0x28] sm:$0xff]
    %v129 = vld [vmem:[#allocation6 + $0x30] sm:$0xff]
    %v130 = vld [vmem:[#allocation6 + $0x38] sm:$0xff]
    %v131 = vld [vmem:[#allocation6 + $0x40] sm:$0xff]
    %v132 = vld [vmem:[#allocation6 + $0x48] sm:$0xff]
    %v133 = vld [vmem:[#allocation6 + $0x50] sm:$0xff]
    %v134 = vld [vmem:[#allocation6 + $0x58] sm:$0xff]
    %v135 = vld [vmem:[#allocation6 + $0x60] sm:$0xff]
    %v136 = vld [vmem:[#allocation6 + $0x68] sm:$0xff]
    %v137 = vld [vmem:[#allocation6 + $0x70] sm:$0xff]
    %v138 = vld [vmem:[#allocation6 + $0x78] sm:$0xff]
    %v139 = vld [vmem:[%s3] sm:$0x1]
    %v141 = vlaneseq
    %v142 = vshrl.u32 %v141, 7
    %v143 = vsub.s32 0, %v142
    %v144 = vrot.slane %v139, %v143
    %146 = vmatprep.subr.mxu0 0.0
    %147 = vmatpush1.msra.mxu0 %v123
    %148 = vmatprep.subr.mxu0 0.0
    %149 = vmatpush1.msra.mxu0 %v124
    %150 = vmatprep.subr.mxu0 0.0
    %151 = vmatpush1.msra.mxu0 %v125
    %152 = vmatprep.subr.mxu0 0.0
    %153 = vmatpush1.msra.mxu0 %v126
    %154 = vmatprep.subr.mxu0 0.0
    %155 = vmatpush1.msra.mxu0 %v127
    %156 = vmatprep.subr.mxu0 0.0
    %157 = vmatpush1.msra.mxu0 %v128
    %158 = vmatprep.subr.mxu0 0.0
    %159 = vmatpush1.msra.mxu0 %v129
    %160 = vmatprep.subr.mxu0 0.0
    %161 = vmatpush1.msra.mxu0 %v130
    %162 = vmatprep.subr.mxu0 0.0
    %163 = vmatpush1.msra.mxu0 %v131
    %164 = vmatprep.subr.mxu0 0.0
    %165 = vmatpush1.msra.mxu0 %v132
    %166 = vmatprep.subr.mxu0 0.0
    %167 = vmatpush1.msra.mxu0 %v133
    %168 = vmatprep.subr.mxu0 0.0
    %169 = vmatpush1.msra.mxu0 %v134
    %170 = vmatprep.subr.mxu0 0.0
    %171 = vmatpush1.msra.mxu0 %v135
    %172 = vmatprep.subr.mxu0 0.0
    %173 = vmatpush1.msra.mxu0 %v136
    %174 = vmatprep.subr.mxu0 0.0
    %175 = vmatpush1.msra.mxu0 %v137
    %176 = vmatprep.subr.mxu0 0.0
    %177 = vmatpush1.msra.mxu0 %v138
    %178 = vmatprep.subr.mxu0 0.0
    %179 = vmatpush1.msra.mxu0 0.0
    %180 = vmatprep.subr.mxu0 0.0
    %181 = vmatpush1.msra.mxu0 0.0
    %182 = vmatprep.subr.mxu0 0.0
    %183 = vmatpush1.msra.mxu0 0.0
    %184 = vmatprep.subr.mxu0 0.0
    %185 = vmatpush1.msra.mxu0 0.0
    %186 = vmatprep.subr.mxu0 0.0
    %187 = vmatpush1.msra.mxu0 0.0
    %188 = vmatprep.subr.mxu0 0.0
    %189 = vmatpush1.msra.mxu0 0.0
    %190 = vmatprep.subr.mxu0 0.0
    %191 = vmatpush1.msra.mxu0 0.0
    %192 = vmatprep.subr.mxu0 0.0
    %193 = vmatpush1.msra.mxu0 0.0
    %194 = vmatprep.subr.mxu0 0.0
    %195 = vmatpush1.msra.mxu0 0.0
    %196 = vmatprep.subr.mxu0 0.0
    %197 = vmatpush1.msra.mxu0 0.0
    %198 = vmatprep.subr.mxu0 0.0
    %199 = vmatpush1.msra.mxu0 0.0
    %200 = vmatprep.subr.mxu0 0.0
    %201 = vmatpush1.msra.mxu0 0.0
    %202 = vmatprep.subr.mxu0 0.0
    %203 = vmatpush1.msra.mxu0 0.0
    %204 = vmatprep.subr.mxu0 0.0
    %205 = vmatpush1.msra.mxu0 0.0
    %206 = vmatprep.subr.mxu0 0.0
    %207 = vmatpush1.msra.mxu0 0.0
    %208 = vmatprep.subr.mxu0 0.0
    %209 = vmatpush1.msra.mxu0 0.0
    %210 = vmatprep.mubr.f32.mxu0 0.0
    %211 = vmatmul.mubr.f32.gmra.mrb[0].mxu0 %v115
    %v212 = vpop.f32.mrb[0].mxu0
    %v213 = vadd.f32 %v144, %v212
    %v214 = vpop.f32.mrb[0].mxu0
    %215 = vmatprep.mubr.f32.mxu0 0.0
    %216 = vmatmul.mubr.f32.gmra.mrb[0].mxu0 %v116
    %v217 = vpop.f32.mrb[0].mxu0
    %v218 = vadd.f32 %v144, %v217
    %v219 = vpop.f32.mrb[0].mxu0
    %220 = vmatprep.mubr.f32.mxu0 0.0
    %221 = vmatmul.mubr.f32.gmra.mrb[0].mxu0 %v117
    %v222 = vpop.f32.mrb[0].mxu0
    %v223 = vadd.f32 %v144, %v222
    %v224 = vpop.f32.mrb[0].mxu0
    %225 = vmatprep.mubr.f32.mxu0 0.0
    %226 = vmatmul.mubr.f32.gmra.mrb[0].mxu0 %v118
    %v227 = vpop.f32.mrb[0].mxu0
    %v228 = vadd.f32 %v144, %v227
    %v229 = vpop.f32.mrb[0].mxu0
    %230 = vmatprep.mubr.f32.mxu0 0.0
    %231 = vmatmul.mubr.f32.gmra.mrb[0].mxu0 %v119
    %v232 = vpop.f32.mrb[0].mxu0
    %v233 = vadd.f32 %v144, %v232
    %v234 = vpop.f32.mrb[0].mxu0
    %235 = vmatprep.mubr.f32.mxu0 0.0
    %236 = vmatmul.mubr.f32.gmra.mrb[0].mxu0 %v120
    %v237 = vpop.f32.mrb[0].mxu0
    %v238 = vadd.f32 %v144, %v237
    %v239 = vpop.f32.mrb[0].mxu0
    %240 = vmatprep.mubr.f32.mxu0 0.0
    %241 = vmatmul.mubr.f32.gmra.mrb[0].mxu0 %v121
    %v242 = vpop.f32.mrb[0].mxu0
    %v243 = vadd.f32 %v144, %v242
    %v244 = vpop.f32.mrb[0].mxu0
    %245 = vmatprep.mubr.f32.mxu0 0.0
    %246 = vmatmul.mubr.f32.gmra.mrb[0].mxu0 %v122
    %v247 = vpop.f32.mrb[0].mxu0
    %v248 = vadd.f32 %v144, %v247
    %v249 = vpop.f32.mrb[0].mxu0
    %250 = vdwg.mxu0
    %251 = vst [vmem:[#allocation2] sm:$0xff] %v213
    %252 = vst [vmem:[#allocation2 + $0x8] sm:$0xff] %v218
    %253 = vst [vmem:[#allocation2 + $0x10] sm:$0xff] %v223
    %254 = vst [vmem:[#allocation2 + $0x18] sm:$0xff] %v228
    %255 = vst [vmem:[#allocation2 + $0x20] sm:$0xff] %v233
    %256 = vst [vmem:[#allocation2 + $0x28] sm:$0xff] %v238
    %257 = vst [vmem:[#allocation2 + $0x30] sm:$0xff] %v243
    %258 = vst [vmem:[#allocation2 + $0x38] sm:$0xff] %v248
    %v259 = vld [vmem:[#allocation8] sm:$0xff]
    %v260 = vld [vmem:[#allocation8 + $0x8] sm:$0xff]
    %v261 = vld [vmem:[#allocation8 + $0x10] sm:$0xff]
    %v262 = vld [vmem:[#allocation8 + $0x18] sm:$0xff]
    %v263 = vld [vmem:[#allocation8 + $0x20] sm:$0xff]
    %v264 = vld [vmem:[#allocation8 + $0x28] sm:$0xff]
    %v265 = vld [vmem:[#allocation8 + $0x30] sm:$0xff]
    %v266 = vld [vmem:[#allocation8 + $0x38] sm:$0xff]
    %v267 = vld [vmem:[#allocation8 + $0x40] sm:$0xff]
    %v268 = vld [vmem:[#allocation8 + $0x48] sm:$0xff]
    %v269 = vld [vmem:[#allocation8 + $0x50] sm:$0xff]
    %v270 = vld [vmem:[#allocation8 + $0x58] sm:$0xff]
    %v271 = vld [vmem:[#allocation8 + $0x60] sm:$0xff]
    %v272 = vld [vmem:[#allocation8 + $0x68] sm:$0xff]
    %v273 = vld [vmem:[#allocation8 + $0x70] sm:$0xff]
    %v274 = vld [vmem:[#allocation8 + $0x78] sm:$0xff]
    %v275 = vld [vmem:[#allocation2] sm:$0xff]
    %276 = vmatprep.subr.mxu0 0.0
    %277 = vmatpush1.msra.mxu0 %v259
    %278 = vmatprep.subr.mxu0 0.0
    %279 = vmatpush1.msra.mxu0 %v260
    %280 = vmatprep.subr.mxu0 0.0
    %281 = vmatpush1.msra.mxu0 %v261
    %282 = vmatprep.subr.mxu0 0.0
    %283 = vmatpush1.msra.mxu0 %v262
    %284 = vmatprep.subr.mxu0 0.0
    %285 = vmatpush1.msra.mxu0 %v263
    %286 = vmatprep.subr.mxu0 0.0
    %287 = vmatpush1.msra.mxu0 %v264
    %288 = vmatprep.subr.mxu0 0.0
    %289 = vmatpush1.msra.mxu0 %v265
    %290 = vmatprep.subr.mxu0 0.0
    %291 = vmatpush1.msra.mxu0 %v266
    %292 = vmatprep.subr.mxu0 0.0
    %293 = vmatpush1.msra.mxu0 %v267
    %294 = vmatprep.subr.mxu0 0.0
    %295 = vmatpush1.msra.mxu0 %v268
    %296 = vmatprep.subr.mxu0 0.0
    %297 = vmatpush1.msra.mxu0 %v269
    %298 = vmatprep.subr.mxu0 0.0
    %299 = vmatpush1.msra.mxu0 %v270
    %300 = vmatprep.subr.mxu0 0.0
    %301 = vmatpush1.msra.mxu0 %v271
    %302 = vmatprep.subr.mxu0 0.0
    %303 = vmatpush1.msra.mxu0 %v272
    %304 = vmatprep.subr.mxu0 0.0
    %305 = vmatpush1.msra.mxu0 %v273
    %306 = vmatprep.subr.mxu0 0.0
    %307 = vmatpush1.msra.mxu0 %v274
    %308 = vmatprep.subr.mxu0 0.0
    %309 = vmatpush1.msra.mxu0 0.0
    %310 = vmatprep.subr.mxu0 0.0
    %311 = vmatpush1.msra.mxu0 0.0
    %312 = vmatprep.subr.mxu0 0.0
    %313 = vmatpush1.msra.mxu0 0.0
    %314 = vmatprep.subr.mxu0 0.0
    %315 = vmatpush1.msra.mxu0 0.0
    %316 = vmatprep.subr.mxu0 0.0
    %317 = vmatpush1.msra.mxu0 0.0
    %318 = vmatprep.subr.mxu0 0.0
    %319 = vmatpush1.msra.mxu0 0.0
    %320 = vmatprep.subr.mxu0 0.0
    %321 = vmatpush1.msra.mxu0 0.0
    %322 = vmatprep.subr.mxu0 0.0
    %323 = vmatpush1.msra.mxu0 0.0
    %324 = vmatprep.subr.mxu0 0.0
    %325 = vmatpush1.msra.mxu0 0.0
    %326 = vmatprep.subr.mxu0 0.0
    %327 = vmatpush1.msra.mxu0 0.0
    %328 = vmatprep.subr.mxu0 0.0
    %329 = vmatpush1.msra.mxu0 0.0
    %330 = vmatprep.subr.mxu0 0.0
    %331 = vmatpush1.msra.mxu0 0.0
    %332 = vmatprep.subr.mxu0 0.0
    %333 = vmatpush1.msra.mxu0 0.0
    %334 = vmatprep.subr.mxu0 0.0
    %335 = vmatpush1.msra.mxu0 0.0
    %336 = vmatprep.subr.mxu0 0.0
    %337 = vmatpush1.msra.mxu0 0.0
    %338 = vmatprep.subr.mxu0 0.0
    %339 = vmatpush1.msra.mxu0 0.0
    %340 = vmatprep.mubr.f32.mxu0 0.0
    %341 = vmatmul.mubr.f32.gmra.mrb[0].mxu0 0.0
    %v342 = vpop.f32.mrb[0].mxu0
    %v343 = vadd.f32 0.0, %v342
    %v344 = vpop.f32.mrb[0].mxu0
    %345 = vdwg.mxu0
    %v346 = vadd.f32 %v275, %v343
    %v347 = vtanh.pop %v346
    %348 = vst [vmem:[#allocation2] sm:$0xff] %v347
    %s349 = scalar_lea.vmem [#allocation2], 8
    %v350 = vld [vmem:[%s349] sm:$0xff]
    %351 = vmatprep.subr.mxu0 0.0
    %352 = vmatpush1.msra.mxu0 %v259
    %353 = vmatprep.subr.mxu0 0.0
    %354 = vmatpush1.msra.mxu0 %v260
    %355 = vmatprep.subr.mxu0 0.0
    %356 = vmatpush1.msra.mxu0 %v261
    %357 = vmatprep.subr.mxu0 0.0
    %358 = vmatpush1.msra.mxu0 %v262
    %359 = vmatprep.subr.mxu0 0.0
    %360 = vmatpush1.msra.mxu0 %v263
    %361 = vmatprep.subr.mxu0 0.0
    %362 = vmatpush1.msra.mxu0 %v264
    %363 = vmatprep.subr.mxu0 0.0
    %364 = vmatpush1.msra.mxu0 %v265
    %365 = vmatprep.subr.mxu0 0.0
    %366 = vmatpush1.msra.mxu0 %v266
    %367 = vmatprep.subr.mxu0 0.0
    %368 = vmatpush1.msra.mxu0 %v267
    %369 = vmatprep.subr.mxu0 0.0
    %370 = vmatpush1.msra.mxu0 %v268
    %371 = vmatprep.subr.mxu0 0.0
    %372 = vmatpush1.msra.mxu0 %v269
    %373 = vmatprep.subr.mxu0 0.0
    %374 = vmatpush1.msra.mxu0 %v270
    %375 = vmatprep.subr.mxu0 0.0
    %376 = vmatpush1.msra.mxu0 %v271
    %377 = vmatprep.subr.mxu0 0.0
    %378 = vmatpush1.msra.mxu0 %v272
    %379 = vmatprep.subr.mxu0 0.0
    %380 = vmatpush1.msra.mxu0 %v273
    %381 = vmatprep.subr.mxu0 0.0
    %382 = vmatpush1.msra.mxu0 %v274
    %383 = vmatprep.subr.mxu0 0.0
    %384 = vmatpush1.msra.mxu0 0.0
    %385 = vmatprep.subr.mxu0 0.0
    %386 = vmatpush1.msra.mxu0 0.0
    %387 = vmatprep.subr.mxu0 0.0
    %388 = vmatpush1.msra.mxu0 0.0
    %389 = vmatprep.subr.mxu0 0.0
    %390 = vmatpush1.msra.mxu0 0.0
    %391 = vmatprep.subr.mxu0 0.0
    %392 = vmatpush1.msra.mxu0 0.0
    %393 = vmatprep.subr.mxu0 0.0
    %394 = vmatpush1.msra.mxu0 0.0
    %395 = vmatprep.subr.mxu0 0.0
    %396 = vmatpush1.msra.mxu0 0.0
    %397 = vmatprep.subr.mxu0 0.0
    %398 = vmatpush1.msra.mxu0 0.0
    %399 = vmatprep.subr.mxu0 0.0
    %400 = vmatpush1.msra.mxu0 0.0
    %401 = vmatprep.subr.mxu0 0.0
    %402 = vmatpush1.msra.mxu0 0.0
    %403 = vmatprep.subr.mxu0 0.0
    %404 = vmatpush1.msra.mxu0 0.0
    %405 = vmatprep.subr.mxu0 0.0
    %406 = vmatpush1.msra.mxu0 0.0
    %407 = vmatprep.subr.mxu0 0.0
    %408 = vmatpush1.msra.mxu0 0.0
    %409 = vmatprep.subr.mxu0 0.0
    %410 = vmatpush1.msra.mxu0 0.0
    %411 = vmatprep.subr.mxu0 0.0
    %412 = vmatpush1.msra.mxu0 0.0
    %413 = vmatprep.subr.mxu0 0.0
    %414 = vmatpush1.msra.mxu0 0.0
    %415 = vmatprep.mubr.f32.mxu0 0.0
    %416 = vmatmul.mubr.f32.gmra.mrb[0].mxu0 %v347
    %v417 = vpop.f32.mrb[0].mxu0
    %v418 = vadd.f32 0.0, %v417
    %v419 = vpop.f32.mrb[0].mxu0
    %420 = vdwg.mxu0
    %v421 = vadd.f32 %v350, %v418
    %v422 = vtanh.pop %v421
    %423 = vst [vmem:[%s349] sm:$0xff] %v422
    %s424 = scalar_lea.vmem [#allocation2], 16
    %v425 = vld [vmem:[%s424] sm:$0xff]
    %426 = vmatprep.subr.mxu0 0.0
    %427 = vmatpush1.msra.mxu0 %v259
    %428 = vmatprep.subr.mxu0 0.0
    %429 = vmatpush1.msra.mxu0 %v260
    %430 = vmatprep.subr.mxu0 0.0
    %431 = vmatpush1.msra.mxu0 %v261
    %432 = vmatprep.subr.mxu0 0.0
    %433 = vmatpush1.msra.mxu0 %v262
    %434 = vmatprep.subr.mxu0 0.0
    %435 = vmatpush1.msra.mxu0 %v263
    %436 = vmatprep.subr.mxu0 0.0
    %437 = vmatpush1.msra.mxu0 %v264
    %438 = vmatprep.subr.mxu0 0.0
    %439 = vmatpush1.msra.mxu0 %v265
    %440 = vmatprep.subr.mxu0 0.0
    %441 = vmatpush1.msra.mxu0 %v266
    %442 = vmatprep.subr.mxu0 0.0
    %443 = vmatpush1.msra.mxu0 %v267
    %444 = vmatprep.subr.mxu0 0.0
    %445 = vmatpush1.msra.mxu0 %v268
    %446 = vmatprep.subr.mxu0 0.0
    %447 = vmatpush1.msra.mxu0 %v269
    %448 = vmatprep.subr.mxu0 0.0
    %449 = vmatpush1.msra.mxu0 %v270
    %450 = vmatprep.subr.mxu0 0.0
    %451 = vmatpush1.msra.mxu0 %v271
    %452 = vmatprep.subr.mxu0 0.0
    %453 = vmatpush1.msra.mxu0 %v272
    %454 = vmatprep.subr.mxu0 0.0
    %455 = vmatpush1.msra.mxu0 %v273
    %456 = vmatprep.subr.mxu0 0.0
    %457 = vmatpush1.msra.mxu0 %v274
    %458 = vmatprep.subr.mxu0 0.0
    %459 = vmatpush1.msra.mxu0 0.0
    %460 = vmatprep.subr.mxu0 0.0
    %461 = vmatpush1.msra.mxu0 0.0
    %462 = vmatprep.subr.mxu0 0.0
    %463 = vmatpush1.msra.mxu0 0.0
    %464 = vmatprep.subr.mxu0 0.0
    %465 = vmatpush1.msra.mxu0 0.0
    %466 = vmatprep.subr.mxu0 0.0
    %467 = vmatpush1.msra.mxu0 0.0
    %468 = vmatprep.subr.mxu0 0.0
    %469 = vmatpush1.msra.mxu0 0.0
    %470 = vmatprep.subr.mxu0 0.0
    %471 = vmatpush1.msra.mxu0 0.0
    %472 = vmatprep.subr.mxu0 0.0
    %473 = vmatpush1.msra.mxu0 0.0
    %474 = vmatprep.subr.mxu0 0.0
    %475 = vmatpush1.msra.mxu0 0.0
    %476 = vmatprep.subr.mxu0 0.0
    %477 = vmatpush1.msra.mxu0 0.0
    %478 = vmatprep.subr.mxu0 0.0
    %479 = vmatpush1.msra.mxu0 0.0
    %480 = vmatprep.subr.mxu0 0.0
    %481 = vmatpush1.msra.mxu0 0.0
    %482 = vmatprep.subr.mxu0 0.0
    %483 = vmatpush1.msra.mxu0 0.0
    %484 = vmatprep.subr.mxu0 0.0
    %485 = vmatpush1.msra.mxu0 0.0
    %486 = vmatprep.subr.mxu0 0.0
    %487 = vmatpush1.msra.mxu0 0.0
    %488 = vmatprep.subr.mxu0 0.0
    %489 = vmatpush1.msra.mxu0 0.0
    %490 = vmatprep.mubr.f32.mxu0 0.0
    %491 = vmatmul.mubr.f32.gmra.mrb[0].mxu0 %v422
    %v492 = vpop.f32.mrb[0].mxu0
    %v493 = vadd.f32 0.0, %v492
    %v494 = vpop.f32.mrb[0].mxu0
    %495 = vdwg.mxu0
    %v496 = vadd.f32 %v425, %v493
    %v497 = vtanh.pop %v496
    %498 = vst [vmem:[%s424] sm:$0xff] %v497
    %s499 = scalar_lea.vmem [#allocation2], 24
    %v500 = vld [vmem:[%s499] sm:$0xff]
    %501 = vmatprep.subr.mxu0 0.0
    %502 = vmatpush1.msra.mxu0 %v259
    %503 = vmatprep.subr.mxu0 0.0
    %504 = vmatpush1.msra.mxu0 %v260
    %505 = vmatprep.subr.mxu0 0.0
    %506 = vmatpush1.msra.mxu0 %v261
    %507 = vmatprep.subr.mxu0 0.0
    %508 = vmatpush1.msra.mxu0 %v262
    %509 = vmatprep.subr.mxu0 0.0
    %510 = vmatpush1.msra.mxu0 %v263
    %511 = vmatprep.subr.mxu0 0.0
    %512 = vmatpush1.msra.mxu0 %v264
    %513 = vmatprep.subr.mxu0 0.0
    %514 = vmatpush1.msra.mxu0 %v265
    %515 = vmatprep.subr.mxu0 0.0
    %516 = vmatpush1.msra.mxu0 %v266
    %517 = vmatprep.subr.mxu0 0.0
    %518 = vmatpush1.msra.mxu0 %v267
    %519 = vmatprep.subr.mxu0 0.0
    %520 = vmatpush1.msra.mxu0 %v268
    %521 = vmatprep.subr.mxu0 0.0
    %522 = vmatpush1.msra.mxu0 %v269
    %523 = vmatprep.subr.mxu0 0.0
    %524 = vmatpush1.msra.mxu0 %v270
    %525 = vmatprep.subr.mxu0 0.0
    %526 = vmatpush1.msra.mxu0 %v271
    %527 = vmatprep.subr.mxu0 0.0
    %528 = vmatpush1.msra.mxu0 %v272
    %529 = vmatprep.subr.mxu0 0.0
    %530 = vmatpush1.msra.mxu0 %v273
    %531 = vmatprep.subr.mxu0 0.0
    %532 = vmatpush1.msra.mxu0 %v274
    %533 = vmatprep.subr.mxu0 0.0
    %534 = vmatpush1.msra.mxu0 0.0
    %535 = vmatprep.subr.mxu0 0.0
    %536 = vmatpush1.msra.mxu0 0.0
    %537 = vmatprep.subr.mxu0 0.0
    %538 = vmatpush1.msra.mxu0 0.0
    %539 = vmatprep.subr.mxu0 0.0
    %540 = vmatpush1.msra.mxu0 0.0
    %541 = vmatprep.subr.mxu0 0.0
    %542 = vmatpush1.msra.mxu0 0.0
    %543 = vmatprep.subr.mxu0 0.0
    %544 = vmatpush1.msra.mxu0 0.0
    %545 = vmatprep.subr.mxu0 0.0
    %546 = vmatpush1.msra.mxu0 0.0
    %547 = vmatprep.subr.mxu0 0.0
    %548 = vmatpush1.msra.mxu0 0.0
    %549 = vmatprep.subr.mxu0 0.0
    %550 = vmatpush1.msra.mxu0 0.0
    %551 = vmatprep.subr.mxu0 0.0
    %552 = vmatpush1.msra.mxu0 0.0
    %553 = vmatprep.subr.mxu0 0.0
    %554 = vmatpush1.msra.mxu0 0.0
    %555 = vmatprep.subr.mxu0 0.0
    %556 = vmatpush1.msra.mxu0 0.0
    %557 = vmatprep.subr.mxu0 0.0
    %558 = vmatpush1.msra.mxu0 0.0
    %559 = vmatprep.subr.mxu0 0.0
    %560 = vmatpush1.msra.mxu0 0.0
    %561 = vmatprep.subr.mxu0 0.0
    %562 = vmatpush1.msra.mxu0 0.0
    %563 = vmatprep.subr.mxu0 0.0
    %564 = vmatpush1.msra.mxu0 0.0
    %565 = vmatprep.mubr.f32.mxu0 0.0
    %566 = vmatmul.mubr.f32.gmra.mrb[0].mxu0 %v497
    %v567 = vpop.f32.mrb[0].mxu0
    %v568 = vadd.f32 0.0, %v567
    %v569 = vpop.f32.mrb[0].mxu0
    %570 = vdwg.mxu0
    %v571 = vadd.f32 %v500, %v568
    %v572 = vtanh.pop %v571
    %573 = vst [vmem:[%s499] sm:$0xff] %v572
    %s574 = scalar_lea.vmem [#allocation2], 32
    %v575 = vld [vmem:[%s574] sm:$0xff]
    %576 = vmatprep.subr.mxu0 0.0
    %577 = vmatpush1.msra.mxu0 %v259
    %578 = vmatprep.subr.mxu0 0.0
    %579 = vmatpush1.msra.mxu0 %v260
    %580 = vmatprep.subr.mxu0 0.0
    %581 = vmatpush1.msra.mxu0 %v261
    %582 = vmatprep.subr.mxu0 0.0
    %583 = vmatpush1.msra.mxu0 %v262
    %584 = vmatprep.subr.mxu0 0.0
    %585 = vmatpush1.msra.mxu0 %v263
    %586 = vmatprep.subr.mxu0 0.0
    %587 = vmatpush1.msra.mxu0 %v264
    %588 = vmatprep.subr.mxu0 0.0
    %589 = vmatpush1.msra.mxu0 %v265
    %590 = vmatprep.subr.mxu0 0.0
    %591 = vmatpush1.msra.mxu0 %v266
    %592 = vmatprep.subr.mxu0 0.0
    %593 = vmatpush1.msra.mxu0 %v267
    %594 = vmatprep.subr.mxu0 0.0
    %595 = vmatpush1.msra.mxu0 %v268
    %596 = vmatprep.subr.mxu0 0.0
    %597 = vmatpush1.msra.mxu0 %v269
    %598 = vmatprep.subr.mxu0 0.0
    %599 = vmatpush1.msra.mxu0 %v270
    %600 = vmatprep.subr.mxu0 0.0
    %601 = vmatpush1.msra.mxu0 %v271
    %602 = vmatprep.subr.mxu0 0.0
    %603 = vmatpush1.msra.mxu0 %v272
    %604 = vmatprep.subr.mxu0 0.0
    %605 = vmatpush1.msra.mxu0 %v273
    %606 = vmatprep.subr.mxu0 0.0
    %607 = vmatpush1.msra.mxu0 %v274
    %608 = vmatprep.subr.mxu0 0.0
    %609 = vmatpush1.msra.mxu0 0.0
    %610 = vmatprep.subr.mxu0 0.0
    %611 = vmatpush1.msra.mxu0 0.0
    %612 = vmatprep.subr.mxu0 0.0
    %613 = vmatpush1.msra.mxu0 0.0
    %614 = vmatprep.subr.mxu0 0.0
    %615 = vmatpush1.msra.mxu0 0.0
    %616 = vmatprep.subr.mxu0 0.0
    %617 = vmatpush1.msra.mxu0 0.0
    %618 = vmatprep.subr.mxu0 0.0
    %619 = vmatpush1.msra.mxu0 0.0
    %620 = vmatprep.subr.mxu0 0.0
    %621 = vmatpush1.msra.mxu0 0.0
    %622 = vmatprep.subr.mxu0 0.0
    %623 = vmatpush1.msra.mxu0 0.0
    %624 = vmatprep.subr.mxu0 0.0
    %625 = vmatpush1.msra.mxu0 0.0
    %626 = vmatprep.subr.mxu0 0.0
    %627 = vmatpush1.msra.mxu0 0.0
    %628 = vmatprep.subr.mxu0 0.0
    %629 = vmatpush1.msra.mxu0 0.0
    %630 = vmatprep.subr.mxu0 0.0
    %631 = vmatpush1.msra.mxu0 0.0
    %632 = vmatprep.subr.mxu0 0.0
    %633 = vmatpush1.msra.mxu0 0.0
    %634 = vmatprep.subr.mxu0 0.0
    %635 = vmatpush1.msra.mxu0 0.0
    %636 = vmatprep.subr.mxu0 0.0
    %637 = vmatpush1.msra.mxu0 0.0
    %638 = vmatprep.subr.mxu0 0.0
    %639 = vmatpush1.msra.mxu0 0.0
    %640 = vmatprep.mubr.f32.mxu0 0.0
    %641 = vmatmul.mubr.f32.gmra.mrb[0].mxu0 %v572
    %v642 = vpop.f32.mrb[0].mxu0
    %v643 = vadd.f32 0.0, %v642
    %v644 = vpop.f32.mrb[0].mxu0
    %645 = vdwg.mxu0
    %v646 = vadd.f32 %v575, %v643
    %v647 = vtanh.pop %v646
    %648 = vst [vmem:[%s574] sm:$0xff] %v647
    %s649 = scalar_lea.vmem [#allocation2], 40
    %v650 = vld [vmem:[%s649] sm:$0xff]
    %651 = vmatprep.subr.mxu0 0.0
    %652 = vmatpush1.msra.mxu0 %v259
    %653 = vmatprep.subr.mxu0 0.0
    %654 = vmatpush1.msra.mxu0 %v260
    %655 = vmatprep.subr.mxu0 0.0
    %656 = vmatpush1.msra.mxu0 %v261
    %657 = vmatprep.subr.mxu0 0.0
    %658 = vmatpush1.msra.mxu0 %v262
    %659 = vmatprep.subr.mxu0 0.0
    %660 = vmatpush1.msra.mxu0 %v263
    %661 = vmatprep.subr.mxu0 0.0
    %662 = vmatpush1.msra.mxu0 %v264
    %663 = vmatprep.subr.mxu0 0.0
    %664 = vmatpush1.msra.mxu0 %v265
    %665 = vmatprep.subr.mxu0 0.0
    %666 = vmatpush1.msra.mxu0 %v266
    %667 = vmatprep.subr.mxu0 0.0
    %668 = vmatpush1.msra.mxu0 %v267
    %669 = vmatprep.subr.mxu0 0.0
    %670 = vmatpush1.msra.mxu0 %v268
    %671 = vmatprep.subr.mxu0 0.0
    %672 = vmatpush1.msra.mxu0 %v269
    %673 = vmatprep.subr.mxu0 0.0
    %674 = vmatpush1.msra.mxu0 %v270
    %675 = vmatprep.subr.mxu0 0.0
    %676 = vmatpush1.msra.mxu0 %v271
    %677 = vmatprep.subr.mxu0 0.0
    %678 = vmatpush1.msra.mxu0 %v272
    %679 = vmatprep.subr.mxu0 0.0
    %680 = vmatpush1.msra.mxu0 %v273
    %681 = vmatprep.subr.mxu0 0.0
    %682 = vmatpush1.msra.mxu0 %v274
    %683 = vmatprep.subr.mxu0 0.0
    %684 = vmatpush1.msra.mxu0 0.0
    %685 = vmatprep.subr.mxu0 0.0
    %686 = vmatpush1.msra.mxu0 0.0
    %687 = vmatprep.subr.mxu0 0.0
    %688 = vmatpush1.msra.mxu0 0.0
    %689 = vmatprep.subr.mxu0 0.0
    %690 = vmatpush1.msra.mxu0 0.0
    %691 = vmatprep.subr.mxu0 0.0
    %692 = vmatpush1.msra.mxu0 0.0
    %693 = vmatprep.subr.mxu0 0.0
    %694 = vmatpush1.msra.mxu0 0.0
    %695 = vmatprep.subr.mxu0 0.0
    %696 = vmatpush1.msra.mxu0 0.0
    %697 = vmatprep.subr.mxu0 0.0
    %698 = vmatpush1.msra.mxu0 0.0
    %699 = vmatprep.subr.mxu0 0.0
    %700 = vmatpush1.msra.mxu0 0.0
    %701 = vmatprep.subr.mxu0 0.0
    %702 = vmatpush1.msra.mxu0 0.0
    %703 = vmatprep.subr.mxu0 0.0
    %704 = vmatpush1.msra.mxu0 0.0
    %705 = vmatprep.subr.mxu0 0.0
    %706 = vmatpush1.msra.mxu0 0.0
    %707 = vmatprep.subr.mxu0 0.0
    %708 = vmatpush1.msra.mxu0 0.0
    %709 = vmatprep.subr.mxu0 0.0
    %710 = vmatpush1.msra.mxu0 0.0
    %711 = vmatprep.subr.mxu0 0.0
    %712 = vmatpush1.msra.mxu0 0.0
    %713 = vmatprep.subr.mxu0 0.0
    %714 = vmatpush1.msra.mxu0 0.0
    %715 = vmatprep.mubr.f32.mxu0 0.0
    %716 = vmatmul.mubr.f32.gmra.mrb[0].mxu0 %v647
    %v717 = vpop.f32.mrb[0].mxu0
    %v718 = vadd.f32 0.0, %v717
    %v719 = vpop.f32.mrb[0].mxu0
    %720 = vdwg.mxu0
    %v721 = vadd.f32 %v650, %v718
    %v722 = vtanh.pop %v721
    %723 = vst [vmem:[%s649] sm:$0xff] %v722
    %s724 = scalar_lea.vmem [#allocation2], 48
    %v725 = vld [vmem:[%s724] sm:$0xff]
    %726 = vmatprep.subr.mxu0 0.0
    %727 = vmatpush1.msra.mxu0 %v259
    %728 = vmatprep.subr.mxu0 0.0
    %729 = vmatpush1.msra.mxu0 %v260
    %730 = vmatprep.subr.mxu0 0.0
    %731 = vmatpush1.msra.mxu0 %v261
    %732 = vmatprep.subr.mxu0 0.0
    %733 = vmatpush1.msra.mxu0 %v262
    %734 = vmatprep.subr.mxu0 0.0
    %735 = vmatpush1.msra.mxu0 %v263
    %736 = vmatprep.subr.mxu0 0.0
    %737 = vmatpush1.msra.mxu0 %v264
    %738 = vmatprep.subr.mxu0 0.0
    %739 = vmatpush1.msra.mxu0 %v265
    %740 = vmatprep.subr.mxu0 0.0
    %741 = vmatpush1.msra.mxu0 %v266
    %742 = vmatprep.subr.mxu0 0.0
    %743 = vmatpush1.msra.mxu0 %v267
    %744 = vmatprep.subr.mxu0 0.0
    %745 = vmatpush1.msra.mxu0 %v268
    %746 = vmatprep.subr.mxu0 0.0
    %747 = vmatpush1.msra.mxu0 %v269
    %748 = vmatprep.subr.mxu0 0.0
    %749 = vmatpush1.msra.mxu0 %v270
    %750 = vmatprep.subr.mxu0 0.0
    %751 = vmatpush1.msra.mxu0 %v271
    %752 = vmatprep.subr.mxu0 0.0
    %753 = vmatpush1.msra.mxu0 %v272
    %754 = vmatprep.subr.mxu0 0.0
    %755 = vmatpush1.msra.mxu0 %v273
    %756 = vmatprep.subr.mxu0 0.0
    %757 = vmatpush1.msra.mxu0 %v274
    %758 = vmatprep.subr.mxu0 0.0
    %759 = vmatpush1.msra.mxu0 0.0
    %760 = vmatprep.subr.mxu0 0.0
    %761 = vmatpush1.msra.mxu0 0.0
    %762 = vmatprep.subr.mxu0 0.0
    %763 = vmatpush1.msra.mxu0 0.0
    %764 = vmatprep.subr.mxu0 0.0
    %765 = vmatpush1.msra.mxu0 0.0
    %766 = vmatprep.subr.mxu0 0.0
    %767 = vmatpush1.msra.mxu0 0.0
    %768 = vmatprep.subr.mxu0 0.0
    %769 = vmatpush1.msra.mxu0 0.0
    %770 = vmatprep.subr.mxu0 0.0
    %771 = vmatpush1.msra.mxu0 0.0
    %772 = vmatprep.subr.mxu0 0.0
    %773 = vmatpush1.msra.mxu0 0.0
    %774 = vmatprep.subr.mxu0 0.0
    %775 = vmatpush1.msra.mxu0 0.0
    %776 = vmatprep.subr.mxu0 0.0
    %777 = vmatpush1.msra.mxu0 0.0
    %778 = vmatprep.subr.mxu0 0.0
    %779 = vmatpush1.msra.mxu0 0.0
    %780 = vmatprep.subr.mxu0 0.0
    %781 = vmatpush1.msra.mxu0 0.0
    %782 = vmatprep.subr.mxu0 0.0
    %783 = vmatpush1.msra.mxu0 0.0
    %784 = vmatprep.subr.mxu0 0.0
    %785 = vmatpush1.msra.mxu0 0.0
    %786 = vmatprep.subr.mxu0 0.0
    %787 = vmatpush1.msra.mxu0 0.0
    %788 = vmatprep.subr.mxu0 0.0
    %789 = vmatpush1.msra.mxu0 0.0
    %790 = vmatprep.mubr.f32.mxu0 0.0
    %791 = vmatmul.mubr.f32.gmra.mrb[0].mxu0 %v722
    %v792 = vpop.f32.mrb[0].mxu0
    %v793 = vadd.f32 0.0, %v792
    %v794 = vpop.f32.mrb[0].mxu0
    %795 = vdwg.mxu0
    %v796 = vadd.f32 %v725, %v793
    %v797 = vtanh.pop %v796
    %798 = vst [vmem:[%s724] sm:$0xff] %v797
    %s799 = scalar_lea.vmem [#allocation2], 56
    %v800 = vld [vmem:[%s799] sm:$0xff]
    %801 = vmatprep.subr.mxu0 0.0
    %802 = vmatpush1.msra.mxu0 %v259
    %803 = vmatprep.subr.mxu0 0.0
    %804 = vmatpush1.msra.mxu0 %v260
    %805 = vmatprep.subr.mxu0 0.0
    %806 = vmatpush1.msra.mxu0 %v261
    %807 = vmatprep.subr.mxu0 0.0
    %808 = vmatpush1.msra.mxu0 %v262
    %809 = vmatprep.subr.mxu0 0.0
    %810 = vmatpush1.msra.mxu0 %v263
    %811 = vmatprep.subr.mxu0 0.0
    %812 = vmatpush1.msra.mxu0 %v264
    %813 = vmatprep.subr.mxu0 0.0
    %814 = vmatpush1.msra.mxu0 %v265
    %815 = vmatprep.subr.mxu0 0.0
    %816 = vmatpush1.msra.mxu0 %v266
    %817 = vmatprep.subr.mxu0 0.0
    %818 = vmatpush1.msra.mxu0 %v267
    %819 = vmatprep.subr.mxu0 0.0
    %820 = vmatpush1.msra.mxu0 %v268
    %821 = vmatprep.subr.mxu0 0.0
    %822 = vmatpush1.msra.mxu0 %v269
    %823 = vmatprep.subr.mxu0 0.0
    %824 = vmatpush1.msra.mxu0 %v270
    %825 = vmatprep.subr.mxu0 0.0
    %826 = vmatpush1.msra.mxu0 %v271
    %827 = vmatprep.subr.mxu0 0.0
    %828 = vmatpush1.msra.mxu0 %v272
    %829 = vmatprep.subr.mxu0 0.0
    %830 = vmatpush1.msra.mxu0 %v273
    %831 = vmatprep.subr.mxu0 0.0
    %832 = vmatpush1.msra.mxu0 %v274
    %833 = vmatprep.subr.mxu0 0.0
    %834 = vmatpush1.msra.mxu0 0.0
    %835 = vmatprep.subr.mxu0 0.0
    %836 = vmatpush1.msra.mxu0 0.0
    %837 = vmatprep.subr.mxu0 0.0
    %838 = vmatpush1.msra.mxu0 0.0
    %839 = vmatprep.subr.mxu0 0.0
    %840 = vmatpush1.msra.mxu0 0.0
    %841 = vmatprep.subr.mxu0 0.0
    %842 = vmatpush1.msra.mxu0 0.0
    %843 = vmatprep.subr.mxu0 0.0
    %844 = vmatpush1.msra.mxu0 0.0
    %845 = vmatprep.subr.mxu0 0.0
    %846 = vmatpush1.msra.mxu0 0.0
    %847 = vmatprep.subr.mxu0 0.0
    %848 = vmatpush1.msra.mxu0 0.0
    %849 = vmatprep.subr.mxu0 0.0
    %850 = vmatpush1.msra.mxu0 0.0
    %851 = vmatprep.subr.mxu0 0.0
    %852 = vmatpush1.msra.mxu0 0.0
    %853 = vmatprep.subr.mxu0 0.0
    %854 = vmatpush1.msra.mxu0 0.0
    %855 = vmatprep.subr.mxu0 0.0
    %856 = vmatpush1.msra.mxu0 0.0
    %857 = vmatprep.subr.mxu0 0.0
    %858 = vmatpush1.msra.mxu0 0.0
    %859 = vmatprep.subr.mxu0 0.0
    %860 = vmatpush1.msra.mxu0 0.0
    %861 = vmatprep.subr.mxu0 0.0
    %862 = vmatpush1.msra.mxu0 0.0
    %863 = vmatprep.subr.mxu0 0.0
    %864 = vmatpush1.msra.mxu0 0.0
    %865 = vmatprep.mubr.f32.mxu0 0.0
    %866 = vmatmul.mubr.f32.gmra.mrb[0].mxu0 %v797
    %v867 = vpop.f32.mrb[0].mxu0
    %v868 = vadd.f32 0.0, %v867
    %v869 = vpop.f32.mrb[0].mxu0
    %870 = vdwg.mxu0
    %v871 = vadd.f32 %v800, %v868
    %v872 = vtanh.pop %v871
    %873 = vst [vmem:[%s799] sm:$0xff] %v872
    %v874 = vld [vmem:[#allocation2] sm:$0xff]
    %v875 = vld [vmem:[#allocation2 + $0x8] sm:$0xff]
    %v876 = vld [vmem:[#allocation2 + $0x10] sm:$0xff]
    %v877 = vld [vmem:[#allocation2 + $0x18] sm:$0xff]
    %v878 = vld [vmem:[#allocation2 + $0x20] sm:$0xff]
    %v879 = vld [vmem:[#allocation2 + $0x28] sm:$0xff]
    %v880 = vld [vmem:[#allocation2 + $0x30] sm:$0xff]
    %v881 = vld [vmem:[#allocation2 + $0x38] sm:$0xff]
    %v882 = vld [vmem:[#allocation9] sm:$0xff]
    %v883 = vld [vmem:[#allocation9 + $0x8] sm:$0xff]
    %v884 = vld [vmem:[#allocation9 + $0x10] sm:$0xff]
    %v885 = vld [vmem:[#allocation9 + $0x18] sm:$0xff]
    %v886 = vld [vmem:[#allocation9 + $0x20] sm:$0xff]
    %v887 = vld [vmem:[#allocation9 + $0x28] sm:$0xff]
    %v888 = vld [vmem:[#allocation9 + $0x30] sm:$0xff]
    %v889 = vld [vmem:[#allocation9 + $0x38] sm:$0xff]
    %v890 = vld [vmem:[#allocation9 + $0x40] sm:$0xff]
    %v891 = vld [vmem:[#allocation9 + $0x48] sm:$0xff]
    %v892 = vld [vmem:[#allocation9 + $0x50] sm:$0xff]
    %v893 = vld [vmem:[#allocation9 + $0x58] sm:$0xff]
    %v894 = vld [vmem:[#allocation9 + $0x60] sm:$0xff]
    %v895 = vld [vmem:[#allocation9 + $0x68] sm:$0xff]
    %v896 = vld [vmem:[#allocation9 + $0x70] sm:$0xff]
    %v897 = vld [vmem:[#allocation9 + $0x78] sm:$0xff]
    %v898 = vld [vmem:[%s6] sm:$0x1]
    %v900 = vlaneseq
    %v901 = vshrl.u32 %v900, 7
    %v902 = vsub.s32 0, %v901
    %v903 = vrot.slane %v898, %v902
    %905 = vmatprep.subr.mxu0 0.0
    %906 = vmatpush1.msra.mxu0 %v882
    %907 = vmatprep.subr.mxu0 0.0
    %908 = vmatpush1.msra.mxu0 %v883
    %909 = vmatprep.subr.mxu0 0.0
    %910 = vmatpush1.msra.mxu0 %v884
    %911 = vmatprep.subr.mxu0 0.0
    %912 = vmatpush1.msra.mxu0 %v885
    %913 = vmatprep.subr.mxu0 0.0
    %914 = vmatpush1.msra.mxu0 %v886
    %915 = vmatprep.subr.mxu0 0.0
    %916 = vmatpush1.msra.mxu0 %v887
    %917 = vmatprep.subr.mxu0 0.0
    %918 = vmatpush1.msra.mxu0 %v888
    %919 = vmatprep.subr.mxu0 0.0
    %920 = vmatpush1.msra.mxu0 %v889
    %921 = vmatprep.subr.mxu0 0.0
    %922 = vmatpush1.msra.mxu0 %v890
    %923 = vmatprep.subr.mxu0 0.0
    %924 = vmatpush1.msra.mxu0 %v891
    %925 = vmatprep.subr.mxu0 0.0
    %926 = vmatpush1.msra.mxu0 %v892
    %927 = vmatprep.subr.mxu0 0.0
    %928 = vmatpush1.msra.mxu0 %v893
    %929 = vmatprep.subr.mxu0 0.0
    %930 = vmatpush1.msra.mxu0 %v894
    %931 = vmatprep.subr.mxu0 0.0
    %932 = vmatpush1.msra.mxu0 %v895
    %933 = vmatprep.subr.mxu0 0.0
    %934 = vmatpush1.msra.mxu0 %v896
    %935 = vmatprep.subr.mxu0 0.0
    %936 = vmatpush1.msra.mxu0 %v897
    %937 = vmatprep.subr.mxu0 0.0
    %938 = vmatpush1.msra.mxu0 0.0
    %939 = vmatprep.subr.mxu0 0.0
    %940 = vmatpush1.msra.mxu0 0.0
    %941 = vmatprep.subr.mxu0 0.0
    %942 = vmatpush1.msra.mxu0 0.0
    %943 = vmatprep.subr.mxu0 0.0
    %944 = vmatpush1.msra.mxu0 0.0
    %945 = vmatprep.subr.mxu0 0.0
    %946 = vmatpush1.msra.mxu0 0.0
    %947 = vmatprep.subr.mxu0 0.0
    %948 = vmatpush1.msra.mxu0 0.0
    %949 = vmatprep.subr.mxu0 0.0
    %950 = vmatpush1.msra.mxu0 0.0
    %951 = vmatprep.subr.mxu0 0.0
    %952 = vmatpush1.msra.mxu0 0.0
    %953 = vmatprep.subr.mxu0 0.0
    %954 = vmatpush1.msra.mxu0 0.0
    %955 = vmatprep.subr.mxu0 0.0
    %956 = vmatpush1.msra.mxu0 0.0
    %957 = vmatprep.subr.mxu0 0.0
    %958 = vmatpush1.msra.mxu0 0.0
    %959 = vmatprep.subr.mxu0 0.0
    %960 = vmatpush1.msra.mxu0 0.0
    %961 = vmatprep.subr.mxu0 0.0
    %962 = vmatpush1.msra.mxu0 0.0
    %963 = vmatprep.subr.mxu0 0.0
    %964 = vmatpush1.msra.mxu0 0.0
    %965 = vmatprep.subr.mxu0 0.0
    %966 = vmatpush1.msra.mxu0 0.0
    %967 = vmatprep.subr.mxu0 0.0
    %968 = vmatpush1.msra.mxu0 0.0
    %969 = vmatprep.mubr.f32.mxu0 0.0
    %970 = vmatmul.mubr.f32.gmra.mrb[0].mxu0 %v874
    %v971 = vpop.f32.mrb[0].mxu0
    %v972 = vadd.f32 %v903, %v971
    %v973 = vpop.f32.mrb[0].mxu0
    %974 = vmatprep.mubr.f32.mxu0 0.0
    %975 = vmatmul.mubr.f32.gmra.mrb[0].mxu0 %v875
    %v976 = vpop.f32.mrb[0].mxu0
    %v977 = vadd.f32 %v903, %v976
    %v978 = vpop.f32.mrb[0].mxu0
    %979 = vmatprep.mubr.f32.mxu0 0.0
    %980 = vmatmul.mubr.f32.gmra.mrb[0].mxu0 %v876
    %v981 = vpop.f32.mrb[0].mxu0
    %v982 = vadd.f32 %v903, %v981
    %v983 = vpop.f32.mrb[0].mxu0
    %984 = vmatprep.mubr.f32.mxu0 0.0
    %985 = vmatmul.mubr.f32.gmra.mrb[0].mxu0 %v877
    %v986 = vpop.f32.mrb[0].mxu0
    %v987 = vadd.f32 %v903, %v986
    %v988 = vpop.f32.mrb[0].mxu0
    %989 = vmatprep.mubr.f32.mxu0 0.0
    %990 = vmatmul.mubr.f32.gmra.mrb[0].mxu0 %v878
    %v991 = vpop.f32.mrb[0].mxu0
    %v992 = vadd.f32 %v903, %v991
    %v993 = vpop.f32.mrb[0].mxu0
    %994 = vmatprep.mubr.f32.mxu0 0.0
    %995 = vmatmul.mubr.f32.gmra.mrb[0].mxu0 %v879
    %v996 = vpop.f32.mrb[0].mxu0
    %v997 = vadd.f32 %v903, %v996
    %v998 = vpop.f32.mrb[0].mxu0
    %999 = vmatprep.mubr.f32.mxu0 0.0
    %1000 = vmatmul.mubr.f32.gmra.mrb[0].mxu0 %v880
    %v1001 = vpop.f32.mrb[0].mxu0
    %v1002 = vadd.f32 %v903, %v1001
    %v1003 = vpop.f32.mrb[0].mxu0
    %1004 = vmatprep.mubr.f32.mxu0 0.0
    %1005 = vmatmul.mubr.f32.gmra.mrb[0].mxu0 %v881
    %v1006 = vpop.f32.mrb[0].mxu0
    %v1007 = vadd.f32 %v903, %v1006
    %v1008 = vpop.f32.mrb[0].mxu0
    %1009 = vdwg.mxu0
    %1010 = vst [vmem:[#allocation2] sm:$0xff] %v972
    %1011 = vst [vmem:[#allocation2 + $0x8] sm:$0xff] %v977
    %1012 = vst [vmem:[#allocation2 + $0x10] sm:$0xff] %v982
    %1013 = vst [vmem:[#allocation2 + $0x18] sm:$0xff] %v987
    %1014 = vst [vmem:[#allocation2 + $0x20] sm:$0xff] %v992
    %1015 = vst [vmem:[#allocation2 + $0x28] sm:$0xff] %v997
    %1016 = vst [vmem:[#allocation2 + $0x30] sm:$0xff] %v1002
    %1017 = vst [vmem:[#allocation2 + $0x38] sm:$0xff] %v1007
    %v1018 = vld [vmem:[#allocation11] sm:$0xff]
    %v1019 = vld [vmem:[#allocation11 + $0x8] sm:$0xff]
    %v1020 = vld [vmem:[#allocation11 + $0x10] sm:$0xff]
    %v1021 = vld [vmem:[#allocation11 + $0x18] sm:$0xff]
    %v1022 = vld [vmem:[#allocation11 + $0x20] sm:$0xff]
    %v1023 = vld [vmem:[#allocation11 + $0x28] sm:$0xff]
    %v1024 = vld [vmem:[#allocation11 + $0x30] sm:$0xff]
    %v1025 = vld [vmem:[#allocation11 + $0x38] sm:$0xff]
    %v1026 = vld [vmem:[#allocation11 + $0x40] sm:$0xff]
    %v1027 = vld [vmem:[#allocation11 + $0x48] sm:$0xff]
    %v1028 = vld [vmem:[#allocation11 + $0x50] sm:$0xff]
    %v1029 = vld [vmem:[#allocation11 + $0x58] sm:$0xff]
    %v1030 = vld [vmem:[#allocation11 + $0x60] sm:$0xff]
    %v1031 = vld [vmem:[#allocation11 + $0x68] sm:$0xff]
    %v1032 = vld [vmem:[#allocation11 + $0x70] sm:$0xff]
    %v1033 = vld [vmem:[#allocation11 + $0x78] sm:$0xff]
    %v1034 = vld [vmem:[#allocation2] sm:$0xff]
    %1035 = vmatprep.subr.mxu0 0.0
    %1036 = vmatpush1.msra.mxu0 %v1018
    %1037 = vmatprep.subr.mxu0 0.0
    %1038 = vmatpush1.msra.mxu0 %v1019
    %1039 = vmatprep.subr.mxu0 0.0
    %1040 = vmatpush1.msra.mxu0 %v1020
    %1041 = vmatprep.subr.mxu0 0.0
    %1042 = vmatpush1.msra.mxu0 %v1021
    %1043 = vmatprep.subr.mxu0 0.0
    %1044 = vmatpush1.msra.mxu0 %v1022
    %1045 = vmatprep.subr.mxu0 0.0
    %1046 = vmatpush1.msra.mxu0 %v1023
    %1047 = vmatprep.subr.mxu0 0.0
    %1048 = vmatpush1.msra.mxu0 %v1024
    %1049 = vmatprep.subr.mxu0 0.0
    %1050 = vmatpush1.msra.mxu0 %v1025
    %1051 = vmatprep.subr.mxu0 0.0
    %1052 = vmatpush1.msra.mxu0 %v1026
    %1053 = vmatprep.subr.mxu0 0.0
    %1054 = vmatpush1.msra.mxu0 %v1027
    %1055 = vmatprep.subr.mxu0 0.0
    %1056 = vmatpush1.msra.mxu0 %v1028
    %1057 = vmatprep.subr.mxu0 0.0
    %1058 = vmatpush1.msra.mxu0 %v1029
    %1059 = vmatprep.subr.mxu0 0.0
    %1060 = vmatpush1.msra.mxu0 %v1030
    %1061 = vmatprep.subr.mxu0 0.0
    %1062 = vmatpush1.msra.mxu0 %v1031
    %1063 = vmatprep.subr.mxu0 0.0
    %1064 = vmatpush1.msra.mxu0 %v1032
    %1065 = vmatprep.subr.mxu0 0.0
    %1066 = vmatpush1.msra.mxu0 %v1033
    %1067 = vmatprep.subr.mxu0 0.0
    %1068 = vmatpush1.msra.mxu0 0.0
    %1069 = vmatprep.subr.mxu0 0.0
    %1070 = vmatpush1.msra.mxu0 0.0
    %1071 = vmatprep.subr.mxu0 0.0
    %1072 = vmatpush1.msra.mxu0 0.0
    %1073 = vmatprep.subr.mxu0 0.0
    %1074 = vmatpush1.msra.mxu0 0.0
    %1075 = vmatprep.subr.mxu0 0.0
    %1076 = vmatpush1.msra.mxu0 0.0
    %1077 = vmatprep.subr.mxu0 0.0
    %1078 = vmatpush1.msra.mxu0 0.0
    %1079 = vmatprep.subr.mxu0 0.0
    %1080 = vmatpush1.msra.mxu0 0.0
    %1081 = vmatprep.subr.mxu0 0.0
    %1082 = vmatpush1.msra.mxu0 0.0
    %1083 = vmatprep.subr.mxu0 0.0
    %1084 = vmatpush1.msra.mxu0 0.0
    %1085 = vmatprep.subr.mxu0 0.0
    %1086 = vmatpush1.msra.mxu0 0.0
    %1087 = vmatprep.subr.mxu0 0.0
    %1088 = vmatpush1.msra.mxu0 0.0
    %1089 = vmatprep.subr.mxu0 0.0
    %1090 = vmatpush1.msra.mxu0 0.0
    %1091 = vmatprep.subr.mxu0 0.0
    %1092 = vmatpush1.msra.mxu0 0.0
    %1093 = vmatprep.subr.mxu0 0.0
    %1094 = vmatpush1.msra.mxu0 0.0
    %1095 = vmatprep.subr.mxu0 0.0
    %1096 = vmatpush1.msra.mxu0 0.0
    %1097 = vmatprep.subr.mxu0 0.0
    %1098 = vmatpush1.msra.mxu0 0.0
    %1099 = vmatprep.mubr.f32.mxu0 0.0
    %1100 = vmatmul.mubr.f32.gmra.mrb[0].mxu0 0.0
    %v1101 = vpop.f32.mrb[0].mxu0
    %v1102 = vadd.f32 0.0, %v1101
    %v1103 = vpop.f32.mrb[0].mxu0
    %1104 = vdwg.mxu0
    %v1105 = vadd.f32 %v1034, %v1102
    %v1106 = vtanh.pop %v1105
    %1107 = vst [vmem:[#allocation2] sm:$0xff] %v1106
    %v1108 = vld [vmem:[%s349] sm:$0xff]
    %1109 = vmatprep.subr.mxu0 0.0
    %1110 = vmatpush1.msra.mxu0 %v1018
    %1111 = vmatprep.subr.mxu0 0.0
    %1112 = vmatpush1.msra.mxu0 %v1019
    %1113 = vmatprep.subr.mxu0 0.0
    %1114 = vmatpush1.msra.mxu0 %v1020
    %1115 = vmatprep.subr.mxu0 0.0
    %1116 = vmatpush1.msra.mxu0 %v1021
    %1117 = vmatprep.subr.mxu0 0.0
    %1118 = vmatpush1.msra.mxu0 %v1022
    %1119 = vmatprep.subr.mxu0 0.0
    %1120 = vmatpush1.msra.mxu0 %v1023
    %1121 = vmatprep.subr.mxu0 0.0
    %1122 = vmatpush1.msra.mxu0 %v1024
    %1123 = vmatprep.subr.mxu0 0.0
    %1124 = vmatpush1.msra.mxu0 %v1025
    %1125 = vmatprep.subr.mxu0 0.0
    %1126 = vmatpush1.msra.mxu0 %v1026
    %1127 = vmatprep.subr.mxu0 0.0
    %1128 = vmatpush1.msra.mxu0 %v1027
    %1129 = vmatprep.subr.mxu0 0.0
    %1130 = vmatpush1.msra.mxu0 %v1028
    %1131 = vmatprep.subr.mxu0 0.0
    %1132 = vmatpush1.msra.mxu0 %v1029
    %1133 = vmatprep.subr.mxu0 0.0
    %1134 = vmatpush1.msra.mxu0 %v1030
    %1135 = vmatprep.subr.mxu0 0.0
    %1136 = vmatpush1.msra.mxu0 %v1031
    %1137 = vmatprep.subr.mxu0 0.0
    %1138 = vmatpush1.msra.mxu0 %v1032
    %1139 = vmatprep.subr.mxu0 0.0
    %1140 = vmatpush1.msra.mxu0 %v1033
    %1141 = vmatprep.subr.mxu0 0.0
    %1142 = vmatpush1.msra.mxu0 0.0
    %1143 = vmatprep.subr.mxu0 0.0
    %1144 = vmatpush1.msra.mxu0 0.0
    %1145 = vmatprep.subr.mxu0 0.0
    %1146 = vmatpush1.msra.mxu0 0.0
    %1147 = vmatprep.subr.mxu0 0.0
    %1148 = vmatpush1.msra.mxu0 0.0
    %1149 = vmatprep.subr.mxu0 0.0
    %1150 = vmatpush1.msra.mxu0 0.0
    %1151 = vmatprep.subr.mxu0 0.0
    %1152 = vmatpush1.msra.mxu0 0.0
    %1153 = vmatprep.subr.mxu0 0.0
    %1154 = vmatpush1.msra.mxu0 0.0
    %1155 = vmatprep.subr.mxu0 0.0
    %1156 = vmatpush1.msra.mxu0 0.0
    %1157 = vmatprep.subr.mxu0 0.0
    %1158 = vmatpush1.msra.mxu0 0.0
    %1159 = vmatprep.subr.mxu0 0.0
    %1160 = vmatpush1.msra.mxu0 0.0
    %1161 = vmatprep.subr.mxu0 0.0
    %1162 = vmatpush1.msra.mxu0 0.0
    %1163 = vmatprep.subr.mxu0 0.0
    %1164 = vmatpush1.msra.mxu0 0.0
    %1165 = vmatprep.subr.mxu0 0.0
    %1166 = vmatpush1.msra.mxu0 0.0
    %1167 = vmatprep.subr.mxu0 0.0
    %1168 = vmatpush1.msra.mxu0 0.0
    %1169 = vmatprep.subr.mxu0 0.0
    %1170 = vmatpush1.msra.mxu0 0.0
    %1171 = vmatprep.subr.mxu0 0.0
    %1172 = vmatpush1.msra.mxu0 0.0
    %1173 = vmatprep.mubr.f32.mxu0 0.0
    %1174 = vmatmul.mubr.f32.gmra.mrb[0].mxu0 %v1106
    %v1175 = vpop.f32.mrb[0].mxu0
    %v1176 = vadd.f32 0.0, %v1175
    %v1177 = vpop.f32.mrb[0].mxu0
    %1178 = vdwg.mxu0
    %v1179 = vadd.f32 %v1108, %v1176
    %v1180 = vtanh.pop %v1179
    %1181 = vst [vmem:[%s349] sm:$0xff] %v1180
    %v1182 = vld [vmem:[%s424] sm:$0xff]
    %1183 = vmatprep.subr.mxu0 0.0
    %1184 = vmatpush1.msra.mxu0 %v1018
    %1185 = vmatprep.subr.mxu0 0.0
    %1186 = vmatpush1.msra.mxu0 %v1019
    %1187 = vmatprep.subr.mxu0 0.0
    %1188 = vmatpush1.msra.mxu0 %v1020
    %1189 = vmatprep.subr.mxu0 0.0
    %1190 = vmatpush1.msra.mxu0 %v1021
    %1191 = vmatprep.subr.mxu0 0.0
    %1192 = vmatpush1.msra.mxu0 %v1022
    %1193 = vmatprep.subr.mxu0 0.0
    %1194 = vmatpush1.msra.mxu0 %v1023
    %1195 = vmatprep.subr.mxu0 0.0
    %1196 = vmatpush1.msra.mxu0 %v1024
    %1197 = vmatprep.subr.mxu0 0.0
    %1198 = vmatpush1.msra.mxu0 %v1025
    %1199 = vmatprep.subr.mxu0 0.0
    %1200 = vmatpush1.msra.mxu0 %v1026
    %1201 = vmatprep.subr.mxu0 0.0
    %1202 = vmatpush1.msra.mxu0 %v1027
    %1203 = vmatprep.subr.mxu0 0.0
    %1204 = vmatpush1.msra.mxu0 %v1028
    %1205 = vmatprep.subr.mxu0 0.0
    %1206 = vmatpush1.msra.mxu0 %v1029
    %1207 = vmatprep.subr.mxu0 0.0
    %1208 = vmatpush1.msra.mxu0 %v1030
    %1209 = vmatprep.subr.mxu0 0.0
    %1210 = vmatpush1.msra.mxu0 %v1031
    %1211 = vmatprep.subr.mxu0 0.0
    %1212 = vmatpush1.msra.mxu0 %v1032
    %1213 = vmatprep.subr.mxu0 0.0
    %1214 = vmatpush1.msra.mxu0 %v1033
    %1215 = vmatprep.subr.mxu0 0.0
    %1216 = vmatpush1.msra.mxu0 0.0
    %1217 = vmatprep.subr.mxu0 0.0
    %1218 = vmatpush1.msra.mxu0 0.0
    %1219 = vmatprep.subr.mxu0 0.0
    %1220 = vmatpush1.msra.mxu0 0.0
    %1221 = vmatprep.subr.mxu0 0.0
    %1222 = vmatpush1.msra.mxu0 0.0
    %1223 = vmatprep.subr.mxu0 0.0
    %1224 = vmatpush1.msra.mxu0 0.0
    %1225 = vmatprep.subr.mxu0 0.0
    %1226 = vmatpush1.msra.mxu0 0.0
    %1227 = vmatprep.subr.mxu0 0.0
    %1228 = vmatpush1.msra.mxu0 0.0
    %1229 = vmatprep.subr.mxu0 0.0
    %1230 = vmatpush1.msra.mxu0 0.0
    %1231 = vmatprep.subr.mxu0 0.0
    %1232 = vmatpush1.msra.mxu0 0.0
    %1233 = vmatprep.subr.mxu0 0.0
    %1234 = vmatpush1.msra.mxu0 0.0
    %1235 = vmatprep.subr.mxu0 0.0
    %1236 = vmatpush1.msra.mxu0 0.0
    %1237 = vmatprep.subr.mxu0 0.0
    %1238 = vmatpush1.msra.mxu0 0.0
    %1239 = vmatprep.subr.mxu0 0.0
    %1240 = vmatpush1.msra.mxu0 0.0
    %1241 = vmatprep.subr.mxu0 0.0
    %1242 = vmatpush1.msra.mxu0 0.0
    %1243 = vmatprep.subr.mxu0 0.0
    %1244 = vmatpush1.msra.mxu0 0.0
    %1245 = vmatprep.subr.mxu0 0.0
    %1246 = vmatpush1.msra.mxu0 0.0
    %1247 = vmatprep.mubr.f32.mxu0 0.0
    %1248 = vmatmul.mubr.f32.gmra.mrb[0].mxu0 %v1180
    %v1249 = vpop.f32.mrb[0].mxu0
    %v1250 = vadd.f32 0.0, %v1249
    %v1251 = vpop.f32.mrb[0].mxu0
    %1252 = vdwg.mxu0
    %v1253 = vadd.f32 %v1182, %v1250
    %v1254 = vtanh.pop %v1253
    %1255 = vst [vmem:[%s424] sm:$0xff] %v1254
    %v1256 = vld [vmem:[%s499] sm:$0xff]
    %1257 = vmatprep.subr.mxu0 0.0
    %1258 = vmatpush1.msra.mxu0 %v1018
    %1259 = vmatprep.subr.mxu0 0.0
    %1260 = vmatpush1.msra.mxu0 %v1019
    %1261 = vmatprep.subr.mxu0 0.0
    %1262 = vmatpush1.msra.mxu0 %v1020
    %1263 = vmatprep.subr.mxu0 0.0
    %1264 = vmatpush1.msra.mxu0 %v1021
    %1265 = vmatprep.subr.mxu0 0.0
    %1266 = vmatpush1.msra.mxu0 %v1022
    %1267 = vmatprep.subr.mxu0 0.0
    %1268 = vmatpush1.msra.mxu0 %v1023
    %1269 = vmatprep.subr.mxu0 0.0
    %1270 = vmatpush1.msra.mxu0 %v1024
    %1271 = vmatprep.subr.mxu0 0.0
    %1272 = vmatpush1.msra.mxu0 %v1025
    %1273 = vmatprep.subr.mxu0 0.0
    %1274 = vmatpush1.msra.mxu0 %v1026
    %1275 = vmatprep.subr.mxu0 0.0
    %1276 = vmatpush1.msra.mxu0 %v1027
    %1277 = vmatprep.subr.mxu0 0.0
    %1278 = vmatpush1.msra.mxu0 %v1028
    %1279 = vmatprep.subr.mxu0 0.0
    %1280 = vmatpush1.msra.mxu0 %v1029
    %1281 = vmatprep.subr.mxu0 0.0
    %1282 = vmatpush1.msra.mxu0 %v1030
    %1283 = vmatprep.subr.mxu0 0.0
    %1284 = vmatpush1.msra.mxu0 %v1031
    %1285 = vmatprep.subr.mxu0 0.0
    %1286 = vmatpush1.msra.mxu0 %v1032
    %1287 = vmatprep.subr.mxu0 0.0
    %1288 = vmatpush1.msra.mxu0 %v1033
    %1289 = vmatprep.subr.mxu0 0.0
    %1290 = vmatpush1.msra.mxu0 0.0
    %1291 = vmatprep.subr.mxu0 0.0
    %1292 = vmatpush1.msra.mxu0 0.0
    %1293 = vmatprep.subr.mxu0 0.0
    %1294 = vmatpush1.msra.mxu0 0.0
    %1295 = vmatprep.subr.mxu0 0.0
    %1296 = vmatpush1.msra.mxu0 0.0
    %1297 = vmatprep.subr.mxu0 0.0
    %1298 = vmatpush1.msra.mxu0 0.0
    %1299 = vmatprep.subr.mxu0 0.0
    %1300 = vmatpush1.msra.mxu0 0.0
    %1301 = vmatprep.subr.mxu0 0.0
    %1302 = vmatpush1.msra.mxu0 0.0
    %1303 = vmatprep.subr.mxu0 0.0
    %1304 = vmatpush1.msra.mxu0 0.0
    %1305 = vmatprep.subr.mxu0 0.0
    %1306 = vmatpush1.msra.mxu0 0.0
    %1307 = vmatprep.subr.mxu0 0.0
    %1308 = vmatpush1.msra.mxu0 0.0
    %1309 = vmatprep.subr.mxu0 0.0
    %1310 = vmatpush1.msra.mxu0 0.0
    %1311 = vmatprep.subr.mxu0 0.0
    %1312 = vmatpush1.msra.mxu0 0.0
    %1313 = vmatprep.subr.mxu0 0.0
    %1314 = vmatpush1.msra.mxu0 0.0
    %1315 = vmatprep.subr.mxu0 0.0
    %1316 = vmatpush1.msra.mxu0 0.0
    %1317 = vmatprep.subr.mxu0 0.0
    %1318 = vmatpush1.msra.mxu0 0.0
    %1319 = vmatprep.subr.mxu0 0.0
    %1320 = vmatpush1.msra.mxu0 0.0
    %1321 = vmatprep.mubr.f32.mxu0 0.0
    %1322 = vmatmul.mubr.f32.gmra.mrb[0].mxu0 %v1254
    %v1323 = vpop.f32.mrb[0].mxu0
    %v1324 = vadd.f32 0.0, %v1323
    %v1325 = vpop.f32.mrb[0].mxu0
    %1326 = vdwg.mxu0
    %v1327 = vadd.f32 %v1256, %v1324
    %v1328 = vtanh.pop %v1327
    %1329 = vst [vmem:[%s499] sm:$0xff] %v1328
    %v1330 = vld [vmem:[%s574] sm:$0xff]
    %1331 = vmatprep.subr.mxu0 0.0
    %1332 = vmatpush1.msra.mxu0 %v1018
    %1333 = vmatprep.subr.mxu0 0.0
    %1334 = vmatpush1.msra.mxu0 %v1019
    %1335 = vmatprep.subr.mxu0 0.0
    %1336 = vmatpush1.msra.mxu0 %v1020
    %1337 = vmatprep.subr.mxu0 0.0
    %1338 = vmatpush1.msra.mxu0 %v1021
    %1339 = vmatprep.subr.mxu0 0.0
    %1340 = vmatpush1.msra.mxu0 %v1022
    %1341 = vmatprep.subr.mxu0 0.0
    %1342 = vmatpush1.msra.mxu0 %v1023
    %1343 = vmatprep.subr.mxu0 0.0
    %1344 = vmatpush1.msra.mxu0 %v1024
    %1345 = vmatprep.subr.mxu0 0.0
    %1346 = vmatpush1.msra.mxu0 %v1025
    %1347 = vmatprep.subr.mxu0 0.0
    %1348 = vmatpush1.msra.mxu0 %v1026
    %1349 = vmatprep.subr.mxu0 0.0
    %1350 = vmatpush1.msra.mxu0 %v1027
    %1351 = vmatprep.subr.mxu0 0.0
    %1352 = vmatpush1.msra.mxu0 %v1028
    %1353 = vmatprep.subr.mxu0 0.0
    %1354 = vmatpush1.msra.mxu0 %v1029
    %1355 = vmatprep.subr.mxu0 0.0
    %1356 = vmatpush1.msra.mxu0 %v1030
    %1357 = vmatprep.subr.mxu0 0.0
    %1358 = vmatpush1.msra.mxu0 %v1031
    %1359 = vmatprep.subr.mxu0 0.0
    %1360 = vmatpush1.msra.mxu0 %v1032
    %1361 = vmatprep.subr.mxu0 0.0
    %1362 = vmatpush1.msra.mxu0 %v1033
    %1363 = vmatprep.subr.mxu0 0.0
    %1364 = vmatpush1.msra.mxu0 0.0
    %1365 = vmatprep.subr.mxu0 0.0
    %1366 = vmatpush1.msra.mxu0 0.0
    %1367 = vmatprep.subr.mxu0 0.0
    %1368 = vmatpush1.msra.mxu0 0.0
    %1369 = vmatprep.subr.mxu0 0.0
    %1370 = vmatpush1.msra.mxu0 0.0
    %1371 = vmatprep.subr.mxu0 0.0
    %1372 = vmatpush1.msra.mxu0 0.0
    %1373 = vmatprep.subr.mxu0 0.0
    %1374 = vmatpush1.msra.mxu0 0.0
    %1375 = vmatprep.subr.mxu0 0.0
    %1376 = vmatpush1.msra.mxu0 0.0
    %1377 = vmatprep.subr.mxu0 0.0
    %1378 = vmatpush1.msra.mxu0 0.0
    %1379 = vmatprep.subr.mxu0 0.0
    %1380 = vmatpush1.msra.mxu0 0.0
    %1381 = vmatprep.subr.mxu0 0.0
    %1382 = vmatpush1.msra.mxu0 0.0
    %1383 = vmatprep.subr.mxu0 0.0
    %1384 = vmatpush1.msra.mxu0 0.0
    %1385 = vmatprep.subr.mxu0 0.0
    %1386 = vmatpush1.msra.mxu0 0.0
    %1387 = vmatprep.subr.mxu0 0.0
    %1388 = vmatpush1.msra.mxu0 0.0
    %1389 = vmatprep.subr.mxu0 0.0
    %1390 = vmatpush1.msra.mxu0 0.0
    %1391 = vmatprep.subr.mxu0 0.0
    %1392 = vmatpush1.msra.mxu0 0.0
    %1393 = vmatprep.subr.mxu0 0.0
    %1394 = vmatpush1.msra.mxu0 0.0
    %1395 = vmatprep.mubr.f32.mxu0 0.0
    %1396 = vmatmul.mubr.f32.gmra.mrb[0].mxu0 %v1328
    %v1397 = vpop.f32.mrb[0].mxu0
    %v1398 = vadd.f32 0.0, %v1397
    %v1399 = vpop.f32.mrb[0].mxu0
    %1400 = vdwg.mxu0
    %v1401 = vadd.f32 %v1330, %v1398
    %v1402 = vtanh.pop %v1401
    %1403 = vst [vmem:[%s574] sm:$0xff] %v1402
    %v1404 = vld [vmem:[%s649] sm:$0xff]
    %1405 = vmatprep.subr.mxu0 0.0
    %1406 = vmatpush1.msra.mxu0 %v1018
    %1407 = vmatprep.subr.mxu0 0.0
    %1408 = vmatpush1.msra.mxu0 %v1019
    %1409 = vmatprep.subr.mxu0 0.0
    %1410 = vmatpush1.msra.mxu0 %v1020
    %1411 = vmatprep.subr.mxu0 0.0
    %1412 = vmatpush1.msra.mxu0 %v1021
    %1413 = vmatprep.subr.mxu0 0.0
    %1414 = vmatpush1.msra.mxu0 %v1022
    %1415 = vmatprep.subr.mxu0 0.0
    %1416 = vmatpush1.msra.mxu0 %v1023
    %1417 = vmatprep.subr.mxu0 0.0
    %1418 = vmatpush1.msra.mxu0 %v1024
    %1419 = vmatprep.subr.mxu0 0.0
    %1420 = vmatpush1.msra.mxu0 %v1025
    %1421 = vmatprep.subr.mxu0 0.0
    %1422 = vmatpush1.msra.mxu0 %v1026
    %1423 = vmatprep.subr.mxu0 0.0
    %1424 = vmatpush1.msra.mxu0 %v1027
    %1425 = vmatprep.subr.mxu0 0.0
    %1426 = vmatpush1.msra.mxu0 %v1028
    %1427 = vmatprep.subr.mxu0 0.0
    %1428 = vmatpush1.msra.mxu0 %v1029
    %1429 = vmatprep.subr.mxu0 0.0
    %1430 = vmatpush1.msra.mxu0 %v1030
    %1431 = vmatprep.subr.mxu0 0.0
    %1432 = vmatpush1.msra.mxu0 %v1031
    %1433 = vmatprep.subr.mxu0 0.0
    %1434 = vmatpush1.msra.mxu0 %v1032
    %1435 = vmatprep.subr.mxu0 0.0
    %1436 = vmatpush1.msra.mxu0 %v1033
    %1437 = vmatprep.subr.mxu0 0.0
    %1438 = vmatpush1.msra.mxu0 0.0
    %1439 = vmatprep.subr.mxu0 0.0
    %1440 = vmatpush1.msra.mxu0 0.0
    %1441 = vmatprep.subr.mxu0 0.0
    %1442 = vmatpush1.msra.mxu0 0.0
    %1443 = vmatprep.subr.mxu0 0.0
    %1444 = vmatpush1.msra.mxu0 0.0
    %1445 = vmatprep.subr.mxu0 0.0
    %1446 = vmatpush1.msra.mxu0 0.0
    %1447 = vmatprep.subr.mxu0 0.0
    %1448 = vmatpush1.msra.mxu0 0.0
    %1449 = vmatprep.subr.mxu0 0.0
    %1450 = vmatpush1.msra.mxu0 0.0
    %1451 = vmatprep.subr.mxu0 0.0
    %1452 = vmatpush1.msra.mxu0 0.0
    %1453 = vmatprep.subr.mxu0 0.0
    %1454 = vmatpush1.msra.mxu0 0.0
    %1455 = vmatprep.subr.mxu0 0.0
    %1456 = vmatpush1.msra.mxu0 0.0
    %1457 = vmatprep.subr.mxu0 0.0
    %1458 = vmatpush1.msra.mxu0 0.0
    %1459 = vmatprep.subr.mxu0 0.0
    %1460 = vmatpush1.msra.mxu0 0.0
    %1461 = vmatprep.subr.mxu0 0.0
    %1462 = vmatpush1.msra.mxu0 0.0
    %1463 = vmatprep.subr.mxu0 0.0
    %1464 = vmatpush1.msra.mxu0 0.0
    %1465 = vmatprep.subr.mxu0 0.0
    %1466 = vmatpush1.msra.mxu0 0.0
    %1467 = vmatprep.subr.mxu0 0.0
    %1468 = vmatpush1.msra.mxu0 0.0
    %1469 = vmatprep.mubr.f32.mxu0 0.0
    %1470 = vmatmul.mubr.f32.gmra.mrb[0].mxu0 %v1402
    %v1471 = vpop.f32.mrb[0].mxu0
    %v1472 = vadd.f32 0.0, %v1471
    %v1473 = vpop.f32.mrb[0].mxu0
    %1474 = vdwg.mxu0
    %v1475 = vadd.f32 %v1404, %v1472
    %v1476 = vtanh.pop %v1475
    %1477 = vst [vmem:[%s649] sm:$0xff] %v1476
    %v1478 = vld [vmem:[%s724] sm:$0xff]
    %1479 = vmatprep.subr.mxu0 0.0
    %1480 = vmatpush1.msra.mxu0 %v1018
    %1481 = vmatprep.subr.mxu0 0.0
    %1482 = vmatpush1.msra.mxu0 %v1019
    %1483 = vmatprep.subr.mxu0 0.0
    %1484 = vmatpush1.msra.mxu0 %v1020
    %1485 = vmatprep.subr.mxu0 0.0
    %1486 = vmatpush1.msra.mxu0 %v1021
    %1487 = vmatprep.subr.mxu0 0.0
    %1488 = vmatpush1.msra.mxu0 %v1022
    %1489 = vmatprep.subr.mxu0 0.0
    %1490 = vmatpush1.msra.mxu0 %v1023
    %1491 = vmatprep.subr.mxu0 0.0
    %1492 = vmatpush1.msra.mxu0 %v1024
    %1493 = vmatprep.subr.mxu0 0.0
    %1494 = vmatpush1.msra.mxu0 %v1025
    %1495 = vmatprep.subr.mxu0 0.0
    %1496 = vmatpush1.msra.mxu0 %v1026
    %1497 = vmatprep.subr.mxu0 0.0
    %1498 = vmatpush1.msra.mxu0 %v1027
    %1499 = vmatprep.subr.mxu0 0.0
    %1500 = vmatpush1.msra.mxu0 %v1028
    %1501 = vmatprep.subr.mxu0 0.0
    %1502 = vmatpush1.msra.mxu0 %v1029
    %1503 = vmatprep.subr.mxu0 0.0
    %1504 = vmatpush1.msra.mxu0 %v1030
    %1505 = vmatprep.subr.mxu0 0.0
    %1506 = vmatpush1.msra.mxu0 %v1031
    %1507 = vmatprep.subr.mxu0 0.0
    %1508 = vmatpush1.msra.mxu0 %v1032
    %1509 = vmatprep.subr.mxu0 0.0
    %1510 = vmatpush1.msra.mxu0 %v1033
    %1511 = vmatprep.subr.mxu0 0.0
    %1512 = vmatpush1.msra.mxu0 0.0
    %1513 = vmatprep.subr.mxu0 0.0
    %1514 = vmatpush1.msra.mxu0 0.0
    %1515 = vmatprep.subr.mxu0 0.0
    %1516 = vmatpush1.msra.mxu0 0.0
    %1517 = vmatprep.subr.mxu0 0.0
    %1518 = vmatpush1.msra.mxu0 0.0
    %1519 = vmatprep.subr.mxu0 0.0
    %1520 = vmatpush1.msra.mxu0 0.0
    %1521 = vmatprep.subr.mxu0 0.0
    %1522 = vmatpush1.msra.mxu0 0.0
    %1523 = vmatprep.subr.mxu0 0.0
    %1524 = vmatpush1.msra.mxu0 0.0
    %1525 = vmatprep.subr.mxu0 0.0
    %1526 = vmatpush1.msra.mxu0 0.0
    %1527 = vmatprep.subr.mxu0 0.0
    %1528 = vmatpush1.msra.mxu0 0.0
    %1529 = vmatprep.subr.mxu0 0.0
    %1530 = vmatpush1.msra.mxu0 0.0
    %1531 = vmatprep.subr.mxu0 0.0
    %1532 = vmatpush1.msra.mxu0 0.0
    %1533 = vmatprep.subr.mxu0 0.0
    %1534 = vmatpush1.msra.mxu0 0.0
    %1535 = vmatprep.subr.mxu0 0.0
    %1536 = vmatpush1.msra.mxu0 0.0
    %1537 = vmatprep.subr.mxu0 0.0
    %1538 = vmatpush1.msra.mxu0 0.0
    %1539 = vmatprep.subr.mxu0 0.0
    %1540 = vmatpush1.msra.mxu0 0.0
    %1541 = vmatprep.subr.mxu0 0.0
    %1542 = vmatpush1.msra.mxu0 0.0
    %1543 = vmatprep.mubr.f32.mxu0 0.0
    %1544 = vmatmul.mubr.f32.gmra.mrb[0].mxu0 %v1476
    %v1545 = vpop.f32.mrb[0].mxu0
    %v1546 = vadd.f32 0.0, %v1545
    %v1547 = vpop.f32.mrb[0].mxu0
    %1548 = vdwg.mxu0
    %v1549 = vadd.f32 %v1478, %v1546
    %v1550 = vtanh.pop %v1549
    %1551 = vst [vmem:[%s724] sm:$0xff] %v1550
    %v1552 = vld [vmem:[%s799] sm:$0xff]
    %1553 = vmatprep.subr.mxu0 0.0
    %1554 = vmatpush1.msra.mxu0 %v1018
    %1555 = vmatprep.subr.mxu0 0.0
    %1556 = vmatpush1.msra.mxu0 %v1019
    %1557 = vmatprep.subr.mxu0 0.0
    %1558 = vmatpush1.msra.mxu0 %v1020
    %1559 = vmatprep.subr.mxu0 0.0
    %1560 = vmatpush1.msra.mxu0 %v1021
    %1561 = vmatprep.subr.mxu0 0.0
    %1562 = vmatpush1.msra.mxu0 %v1022
    %1563 = vmatprep.subr.mxu0 0.0
    %1564 = vmatpush1.msra.mxu0 %v1023
    %1565 = vmatprep.subr.mxu0 0.0
    %1566 = vmatpush1.msra.mxu0 %v1024
    %1567 = vmatprep.subr.mxu0 0.0
    %1568 = vmatpush1.msra.mxu0 %v1025
    %1569 = vmatprep.subr.mxu0 0.0
    %1570 = vmatpush1.msra.mxu0 %v1026
    %1571 = vmatprep.subr.mxu0 0.0
    %1572 = vmatpush1.msra.mxu0 %v1027
    %1573 = vmatprep.subr.mxu0 0.0
    %1574 = vmatpush1.msra.mxu0 %v1028
    %1575 = vmatprep.subr.mxu0 0.0
    %1576 = vmatpush1.msra.mxu0 %v1029
    %1577 = vmatprep.subr.mxu0 0.0
    %1578 = vmatpush1.msra.mxu0 %v1030
    %1579 = vmatprep.subr.mxu0 0.0
    %1580 = vmatpush1.msra.mxu0 %v1031
    %1581 = vmatprep.subr.mxu0 0.0
    %1582 = vmatpush1.msra.mxu0 %v1032
    %1583 = vmatprep.subr.mxu0 0.0
    %1584 = vmatpush1.msra.mxu0 %v1033
    %1585 = vmatprep.subr.mxu0 0.0
    %1586 = vmatpush1.msra.mxu0 0.0
    %1587 = vmatprep.subr.mxu0 0.0
    %1588 = vmatpush1.msra.mxu0 0.0
    %1589 = vmatprep.subr.mxu0 0.0
    %1590 = vmatpush1.msra.mxu0 0.0
    %1591 = vmatprep.subr.mxu0 0.0
    %1592 = vmatpush1.msra.mxu0 0.0
    %1593 = vmatprep.subr.mxu0 0.0
    %1594 = vmatpush1.msra.mxu0 0.0
    %1595 = vmatprep.subr.mxu0 0.0
    %1596 = vmatpush1.msra.mxu0 0.0
    %1597 = vmatprep.subr.mxu0 0.0
    %1598 = vmatpush1.msra.mxu0 0.0
    %1599 = vmatprep.subr.mxu0 0.0
    %1600 = vmatpush1.msra.mxu0 0.0
    %1601 = vmatprep.subr.mxu0 0.0
    %1602 = vmatpush1.msra.mxu0 0.0
    %1603 = vmatprep.subr.mxu0 0.0
    %1604 = vmatpush1.msra.mxu0 0.0
    %1605 = vmatprep.subr.mxu0 0.0
    %1606 = vmatpush1.msra.mxu0 0.0
    %1607 = vmatprep.subr.mxu0 0.0
    %1608 = vmatpush1.msra.mxu0 0.0
    %1609 = vmatprep.subr.mxu0 0.0
    %1610 = vmatpush1.msra.mxu0 0.0
    %1611 = vmatprep.subr.mxu0 0.0
    %1612 = vmatpush1.msra.mxu0 0.0
    %1613 = vmatprep.subr.mxu0 0.0
    %1614 = vmatpush1.msra.mxu0 0.0
    %1615 = vmatprep.subr.mxu0 0.0
    %1616 = vmatpush1.msra.mxu0 0.0
    %1617 = vmatprep.mubr.f32.mxu0 0.0
    %1618 = vmatmul.mubr.f32.gmra.mrb[0].mxu0 %v1550
    %v1619 = vpop.f32.mrb[0].mxu0
    %v1620 = vadd.f32 0.0, %v1619
    %v1621 = vpop.f32.mrb[0].mxu0
    %1622 = vdwg.mxu0
    %v1623 = vadd.f32 %v1552, %v1620
    %v1624 = vtanh.pop %v1623
    %1625 = vst [vmem:[%s799] sm:$0xff] %v1624
    %v1626 = vld [vmem:[%s574] sm:$0xff]
    %v1627 = vld [vmem:[%s574 + $0x8] sm:$0xff]
    %v1628 = vld [vmem:[%s574 + $0x10] sm:$0xff]
    %v1629 = vld [vmem:[%s574 + $0x18] sm:$0xff]
    %v1630 = vld [vmem:[#allocation12] sm:$0xff]
    %v1631 = vld [vmem:[#allocation12 + $0x8] sm:$0xff]
    %v1632 = vld [vmem:[#allocation12 + $0x10] sm:$0xff]
    %v1633 = vld [vmem:[#allocation12 + $0x18] sm:$0xff]
    %v1634 = vld [vmem:[#allocation12 + $0x20] sm:$0xff]
    %v1635 = vld [vmem:[#allocation12 + $0x28] sm:$0xff]
    %v1636 = vld [vmem:[#allocation12 + $0x30] sm:$0xff]
    %v1637 = vld [vmem:[#allocation12 + $0x38] sm:$0xff]
    %v1638 = vld [vmem:[#allocation12 + $0x40] sm:$0xff]
    %v1639 = vld [vmem:[#allocation12 + $0x48] sm:$0xff]
    %v1640 = vld [vmem:[#allocation12 + $0x50] sm:$0xff]
    %v1641 = vld [vmem:[#allocation12 + $0x58] sm:$0xff]
    %v1642 = vld [vmem:[#allocation12 + $0x60] sm:$0xff]
    %v1643 = vld [vmem:[#allocation12 + $0x68] sm:$0xff]
    %v1644 = vld [vmem:[#allocation12 + $0x70] sm:$0xff]
    %v1645 = vld [vmem:[#allocation12 + $0x78] sm:$0xff]
    %v1646 = vld [vmem:[%s8] sm:$0x1]
    %v1648 = vlaneseq
    %v1649 = vshrl.u32 %v1648, 7
    %v1650 = vsub.s32 0, %v1649
    %v1651 = vrot.slane %v1646, %v1650
    %1653 = vmatprep.subr.mxu0 0.0
    %1654 = vmatpush1.msra.mxu0 %v1630
    %1655 = vmatprep.subr.mxu0 0.0
    %1656 = vmatpush1.msra.mxu0 %v1631
    %1657 = vmatprep.subr.mxu0 0.0
    %1658 = vmatpush1.msra.mxu0 %v1632
    %1659 = vmatprep.subr.mxu0 0.0
    %1660 = vmatpush1.msra.mxu0 %v1633
    %1661 = vmatprep.subr.mxu0 0.0
    %1662 = vmatpush1.msra.mxu0 %v1634
    %1663 = vmatprep.subr.mxu0 0.0
    %1664 = vmatpush1.msra.mxu0 %v1635
    %1665 = vmatprep.subr.mxu0 0.0
    %1666 = vmatpush1.msra.mxu0 %v1636
    %1667 = vmatprep.subr.mxu0 0.0
    %1668 = vmatpush1.msra.mxu0 %v1637
    %1669 = vmatprep.subr.mxu0 0.0
    %1670 = vmatpush1.msra.mxu0 %v1638
    %1671 = vmatprep.subr.mxu0 0.0
    %1672 = vmatpush1.msra.mxu0 %v1639
    %1673 = vmatprep.subr.mxu0 0.0
    %1674 = vmatpush1.msra.mxu0 %v1640
    %1675 = vmatprep.subr.mxu0 0.0
    %1676 = vmatpush1.msra.mxu0 %v1641
    %1677 = vmatprep.subr.mxu0 0.0
    %1678 = vmatpush1.msra.mxu0 %v1642
    %1679 = vmatprep.subr.mxu0 0.0
    %1680 = vmatpush1.msra.mxu0 %v1643
    %1681 = vmatprep.subr.mxu0 0.0
    %1682 = vmatpush1.msra.mxu0 %v1644
    %1683 = vmatprep.subr.mxu0 0.0
    %1684 = vmatpush1.msra.mxu0 %v1645
    %1685 = vmatprep.subr.mxu0 0.0
    %1686 = vmatpush1.msra.mxu0 0.0
    %1687 = vmatprep.subr.mxu0 0.0
    %1688 = vmatpush1.msra.mxu0 0.0
    %1689 = vmatprep.subr.mxu0 0.0
    %1690 = vmatpush1.msra.mxu0 0.0
    %1691 = vmatprep.subr.mxu0 0.0
    %1692 = vmatpush1.msra.mxu0 0.0
    %1693 = vmatprep.subr.mxu0 0.0
    %1694 = vmatpush1.msra.mxu0 0.0
    %1695 = vmatprep.subr.mxu0 0.0
    %1696 = vmatpush1.msra.mxu0 0.0
    %1697 = vmatprep.subr.mxu0 0.0
    %1698 = vmatpush1.msra.mxu0 0.0
    %1699 = vmatprep.subr.mxu0 0.0
    %1700 = vmatpush1.msra.mxu0 0.0
    %1701 = vmatprep.subr.mxu0 0.0
    %1702 = vmatpush1.msra.mxu0 0.0
    %1703 = vmatprep.subr.mxu0 0.0
    %1704 = vmatpush1.msra.mxu0 0.0
    %1705 = vmatprep.subr.mxu0 0.0
    %1706 = vmatpush1.msra.mxu0 0.0
    %1707 = vmatprep.subr.mxu0 0.0
    %1708 = vmatpush1.msra.mxu0 0.0
    %1709 = vmatprep.subr.mxu0 0.0
    %1710 = vmatpush1.msra.mxu0 0.0
    %1711 = vmatprep.subr.mxu0 0.0
    %1712 = vmatpush1.msra.mxu0 0.0
    %1713 = vmatprep.subr.mxu0 0.0
    %1714 = vmatpush1.msra.mxu0 0.0
    %1715 = vmatprep.subr.mxu0 0.0
    %1716 = vmatpush1.msra.mxu0 0.0
    %1717 = vmatprep.mubr.f32.mxu0 0.0
    %1718 = vmatmul.mubr.f32.gmra.mrb[0].mxu0 %v1626
    %v1719 = vpop.f32.mrb[0].mxu0
    %v1720 = vadd.f32 %v1651, %v1719
    %v1721 = vpop.f32.mrb[0].mxu0
    %1722 = vmatprep.mubr.f32.mxu0 0.0
    %1723 = vmatmul.mubr.f32.gmra.mrb[0].mxu0 %v1627
    %v1724 = vpop.f32.mrb[0].mxu0
    %v1725 = vadd.f32 %v1651, %v1724
    %v1726 = vpop.f32.mrb[0].mxu0
    %1727 = vmatprep.mubr.f32.mxu0 0.0
    %1728 = vmatmul.mubr.f32.gmra.mrb[0].mxu0 %v1628
    %v1729 = vpop.f32.mrb[0].mxu0
    %v1730 = vadd.f32 %v1651, %v1729
    %v1731 = vpop.f32.mrb[0].mxu0
    %1732 = vmatprep.mubr.f32.mxu0 0.0
    %1733 = vmatmul.mubr.f32.gmra.mrb[0].mxu0 %v1629
    %v1734 = vpop.f32.mrb[0].mxu0
    %v1735 = vadd.f32 %v1651, %v1734
    %v1736 = vpop.f32.mrb[0].mxu0
    %1737 = vdwg.mxu0
    %1738 = vst [vmem:[#allocation14] sm:$0xff] %v1720
    %1739 = vst [vmem:[#allocation14 + $0x8] sm:$0xff] %v1725
    %1740 = vst [vmem:[#allocation14 + $0x10] sm:$0xff] %v1730
    %1741 = vst [vmem:[#allocation14 + $0x18] sm:$0xff] %v1735
    // Predicated region
    $region62: #{tpu_custom_call.1} parent=1 // pred_check
      _
    $region63: #{tpu_custom_call.1} parent=1 // pred_check_branch
      %1743 = sbr.rel (0) target = $region65
    $region64: #{tpu_custom_call.1} parent=1 // pred_region
      %s1745 = ssub.s32 512, 512
      %1746 = vsyncadd [#allocation5], %s1745
      %s1747 = sshll.u32 [#allocation14], 4
      %s1748 = int_to_ptr.vmem [resolvable:$true] %s1747
      %1753 = dma.vmem_to_hbm [thread:$0]  %s1748, 512, %s9, [#allocation5], 128, 128, 8
    $region65: #{tpu_custom_call.1} parent=1 // pred_fallthru
      _
    // Predicated region
    $region66: #{tpu_custom_call.1} parent=1 // pred_check
      _
    $region67: #{tpu_custom_call.1} parent=1 // pred_check_branch
      %1755 = sbr.rel (0) target = $region69
    $region68: #{tpu_custom_call.1} parent=1 // pred_region
      %1756 = dma.done [#allocation5], 512
    $region69: #{tpu_custom_call.1} parent=1 // pred_fallthru
      _
    %1757 = vsyncpa [#allocation4], 1
    %1758 = vsyncpa [#allocation7], 1
    %1759 = vsyncpa [#allocation10], 1
    %1760 = vsyncpa [#allocation13], 1
    %1761 = vsyncpa [#allocation5], 1

</llo_original>
